<compile_context>
chip_gen: v6e
topology: v6e:2x2x1
jax: 0.10.0
libtpu: 0.0.40
codegen_flags: <defaults>
</compile_context>

<pallas_src>
import functools
import math

import jax
import jax.numpy as jnp
from jax.experimental import pallas as pl
from jax.experimental.pallas import tpu as pltpu


def _round_up(a, b):
    return (a + b - 1) // b * b


# ----------------------------- Pallas kernel ------------------------------ #

def _mdconv_kernel(sc_ref, x_ref, w3_ref, b_ref, o_ref, *, K2, W, TQ):
    """Fused modulated-deformable im2col + conv GEMM for one (batch, Q-tile).

    sc_ref : (1, 1, 3, K2*TQ)    f32   fused py / px / sigmoid-mask, tap-major lanes
    x_ref  : (1, C*W, H)         bf16  image, sublane index d = c*W + w
    w3_ref : (K2, Cout_pad, C*W) bf16  conv weight per tap, channel rows repeated W x
    b_ref  : (Cout_pad, 1)       f32   bias column (broadcast over lanes)
    o_ref  : (1, Cout_pad, TQ)   f32   output tile (Cout on sublanes, Q on lanes)
    """
    x = x_ref[0]                                     # (C*W, H) bf16
    CW, H = x.shape

    py = sc_ref[0, 0, 0:1, :]                        # (1, K2*TQ) f32
    px = sc_ref[0, 0, 1:2, :]
    msk = sc_ref[0, 0, 2:3, :]

    # y "hat" weights for all K2 taps at once, modulation mask folded in:
    #   wy[h, k*TQ+q] = relu(1 - |py[k,q] - h|) * m[k,q]
    h_col = jax.lax.broadcasted_iota(jnp.int32, (H, 1), 0).astype(jnp.float32)
    wy = jnp.maximum(0.0, 1.0 - jnp.abs(py - h_col)) * msk           # (H, K2*TQ)

    # Stage A: ONE long-N GEMM over all taps (shared LHS x), bf16 MXU, f32 acc.
    tmp = jnp.dot(x, wy.astype(jnp.bfloat16),
                  preferred_element_type=jnp.float32)                # (CW, K2*TQ) f32

    # x "hat" weights, periodic per channel block along sublanes (d % W == w).
    d_col = jax.lax.broadcasted_iota(jnp.int32, (CW, 1), 0)
    w_col = (d_col % W).astype(jnp.float32)
    wxt = jnp.maximum(0.0, 1.0 - jnp.abs(px - w_col))                # (CW, K2*TQ)
    prod = (tmp * wxt).astype(jnp.bfloat16)                          # (CW, K2*TQ) bf16

    # Stage B: per-tap conv GEMM; contraction over C*W folds the W-reduction
    # into the conv weight.  Static TQ-aligned lane slices, f32 accumulate.
    acc = jnp.dot(w3_ref[0], prod[:, 0:TQ],
                  preferred_element_type=jnp.float32)                # (Cout_pad, TQ)
    for k in range(1, K2):
        acc = acc + jnp.dot(w3_ref[k], prod[:, k * TQ:(k + 1) * TQ],
                            preferred_element_type=jnp.float32)

    # Bias only in the epilogue; lane-dense store.
    o_ref[0] = (acc + b_ref[...]).astype(o_ref.dtype)


# ------------------------------ Pallas wrapper ----------------------------- #

def _mdeform_conv(x, py, px, msk, weight, bias, Hout, Wout, max_tq=512):
    """Modulated deformable conv given per-tap sampling positions and mask.

    x      : (N, C, H, W)       f32
    py, px : (N, K2, Q)         f32   absolute sampling positions, Q = Hout*Wout
    msk    : (N, K2, Q)         f32   modulation mask (already sigmoid-ed)
    weight : (Cout, C, kh, kw)  f32
    bias   : (Cout,)            f32
    """
    N, C, H, W = x.shape
    Cout = weight.shape[0]
    K2 = py.shape[1]
    Q = Hout * Wout
    CW = C * W

    # Lane-dense Q tile: multiple of 128, as big as VMEM comfortably allows.
    TQ = min(max_tq, _round_up(Q, 128))
    TQ = max(128, (TQ // 128) * 128)
    # Crude VMEM cap for the (C*W, K2*TQ) stage-A/B temporaries (f32+f32+bf16).
    while TQ > 128 and CW * K2 * TQ * 10 > 24 * 1024 * 1024:
        TQ -= 128
    Qpad = _round_up(Q, TQ)
    ntiles = Qpad // TQ
    pad = Qpad - Q

    if pad:
        # Padded output pixels sample nothing (hat weights zero, mask zero) and
        # are sliced off after the kernel.
        py = jnp.pad(py, ((0, 0), (0, 0), (0, pad)), constant_values=-10.0)
        px = jnp.pad(px, ((0, 0), (0, 0), (0, pad)), constant_values=-10.0)
        msk = jnp.pad(msk, ((0, 0), (0, 0), (0, pad)), constant_values=0.0)

    # Fused scalar tensor, lane-dense per tile:
    #   sc[n, t, f, k*TQ + q] = field f (0=py, 1=px, 2=mask) of tap k at
    #   output pixel t*TQ + q.
    sc = jnp.stack([py, px, msk], axis=1).astype(jnp.float32)        # (N,3,K2,Qpad)
    sc = sc.reshape(N, 3, K2, ntiles, TQ)
    sc = jnp.transpose(sc, (0, 3, 1, 2, 4)).reshape(N, ntiles, 3, K2 * TQ)

    # Image with (c, w) on sublanes and H on lanes: x_t[n, c*W + w, h] = x[n,c,h,w].
    x_t = jnp.transpose(x, (0, 1, 3, 2)).reshape(N, CW, H).astype(jnp.bfloat16)

    # Conv weight per tap, each channel row repeated W times so row c*W + w
    # carries weight[co, c, k]; the W-reduction is folded into the conv GEMM.
    Cout_pad = _round_up(Cout, 16)
    w3 = jnp.transpose(weight.reshape(Cout, C, K2), (2, 0, 1))       # (K2, Cout, C)
    w3 = jnp.repeat(w3, W, axis=2)                                   # (K2, Cout, CW)
    if Cout_pad != Cout:
        w3 = jnp.pad(w3, ((0, 0), (0, Cout_pad - Cout), (0, 0)))
    w3 = w3.astype(jnp.bfloat16)
    b2 = jnp.pad(bias, (0, Cout_pad - Cout)).reshape(Cout_pad, 1).astype(jnp.float32)

    # Keep the batch axis as the megacore-split axis when possible so two cores
    # never re-DMA the same per-batch x block.
    dim_sem = ("parallel", "arbitrary") if N > 1 else ("parallel", "parallel")

    out = pl.pallas_call(
        functools.partial(_mdconv_kernel, K2=K2, W=W, TQ=TQ),
        out_shape=jax.ShapeDtypeStruct((N, Cout_pad, Qpad), jnp.float32),
        grid=(N, ntiles),
        in_specs=[
            pl.BlockSpec((1, 1, 3, K2 * TQ), lambda n, t: (n, t, 0, 0)),
            pl.BlockSpec((1, CW, H), lambda n, t: (n, 0, 0)),
            pl.BlockSpec((K2, Cout_pad, CW), lambda n, t: (0, 0, 0)),
            pl.BlockSpec((Cout_pad, 1), lambda n, t: (0, 0)),
        ],
        out_specs=pl.BlockSpec((1, Cout_pad, TQ), lambda n, t: (n, 0, t)),
        compiler_params=pltpu.CompilerParams(
            dimension_semantics=dim_sem,
            vmem_limit_bytes=40 * 1024 * 1024),
    )(sc, x_t, w3, b2)

    # Output already lives in (N, Cout, Q) layout: drop padding, fold Q.
    return out[:, :Cout, :Q].reshape(N, Cout, Hout, Wout)


# ------------------------------ glue (JAX) -------------------------------- #

def _base_positions(Hout, Wout, kh, kw, stride, padding, dilation):
    sh, sw = stride
    ph, pw = padding
    dh, dw = dilation
    K2 = kh * kw
    i_of_k = (jnp.arange(K2) // kw).astype(jnp.float32)
    j_of_k = (jnp.arange(K2) % kw).astype(jnp.float32)
    ho = jnp.arange(Hout, dtype=jnp.float32)
    wo = jnp.arange(Wout, dtype=jnp.float32)
    base_y = ho[None, :, None] * sh - ph + i_of_k[:, None, None] * dh   # (K2,Hout,1)
    base_x = wo[None, None, :] * sw - pw + j_of_k[:, None, None] * dw   # (K2,1,Wout)
    return (jnp.broadcast_to(base_y, (K2, Hout, Wout)),
            jnp.broadcast_to(base_x, (K2, Hout, Wout)))


def _predict_offsets(x, off_w, off_b, kh, kw, stride, padding):
    """ModulatedDeformConvPack: conv_offset -> (dy, dx, sigmoid(mask)).

    conv_offset is a *plain* conv, so it uses XLA's native (near-roofline) conv
    instead of routing it through the deformable kernel with zero offsets.
    """
    K2 = kh * kw
    s, p = stride, padding
    off_out = jax.lax.conv_general_dilated(
        x, off_w, window_strides=(s, s), padding=[(p, p), (p, p)],
        dimension_numbers=('NCHW', 'OIHW', 'NCHW')) + off_b.reshape(1, -1, 1, 1)
    o1 = off_out[:, :K2]
    o2 = off_out[:, K2:2 * K2]
    mask = jax.nn.sigmoid(off_out[:, 2 * K2:])
    offset = jnp.concatenate([o1, o2], axis=1)             # (N, 2*K2, Ho, Wo)
    # CUDA layout: channel 2k = dy of tap k, channel 2k+1 = dx of tap k.
    off_y = offset[:, 0::2]
    off_x = offset[:, 1::2]
    return off_y, off_x, mask


def modulated_deform_conv_pack_forward(x, weight, bias, off_w, off_b,
                                       stride=1, padding=0, dilation=1,
                                       max_tq=512):
    """ModulatedDeformConvPack.forward (groups == 1, deformable_groups == 1)."""
    # TODO(synk): groups > 1 / deformable_groups > 1 not implemented (AANet uses 1/1).
    N, C, H, W = x.shape
    Cout, Cin_w, kh, kw = weight.shape
    assert Cin_w == C
    s, p, d = stride, padding, dilation
    Hout = (H + 2 * p - (d * (kh - 1) + 1)) // s + 1
    Wout = (W + 2 * p - (d * (kw - 1) + 1)) // s + 1
    K2 = kh * kw

    off_y, off_x, mask = _predict_offsets(x, off_w, off_b, kh, kw, s, p)

    base_y, base_x = _base_positions(Hout, Wout, kh, kw, (s, s), (p, p), (d, d))
    py = (base_y[None] + off_y).reshape(N, K2, Hout * Wout)
    px = (base_x[None] + off_x).reshape(N, K2, Hout * Wout)
    msk = mask.reshape(N, K2, Hout * Wout)
    return _mdeform_conv(x, py, px, msk, weight, bias, Hout, Wout, max_tq=max_tq)


# ------------------------- pure-JAX reference ------------------------------ #

def _modulated_deform_conv_ref(x, off_y, off_x, mask, weight, bias,
                               stride, padding, dilation):
    """Explicit bilinear gather + mask modulation (matches CUDA semantics)."""
    N, C, H, W = x.shape
    Cout, _, kh, kw = weight.shape
    K2 = kh * kw
    s, p, d = stride, padding, dilation
    Hout = (H + 2 * p - (d * (kh - 1) + 1)) // s + 1
    Wout = (W + 2 * p - (d * (kw - 1) + 1)) // s + 1
    base_y, base_x = _base_positions(Hout, Wout, kh, kw, (s, s), (p, p), (d, d))
    py = base_y[None] + off_y
    px = base_x[None] + off_x
    y0 = jnp.floor(py)
    x0 = jnp.floor(px)
    ly = py - y0
    lx = px - x0

    def sample(yf, xf):
        valid = (yf >= 0) & (yf < H) & (xf >= 0) & (xf < W)
        yc = jnp.clip(yf, 0, H - 1).astype(jnp.int32)
        xc = jnp.clip(xf, 0, W - 1).astype(jnp.int32)
        v = jax.vmap(lambda img, yy, xx: img[:, yy, xx])(x, yc, xc)  # (N,C,K2,Ho,Wo)
        return jnp.where(valid[:, None], v, 0.0)

    val = (sample(y0, x0) * ((1 - ly) * (1 - lx))[:, None]
           + sample(y0, x0 + 1) * ((1 - ly) * lx)[:, None]
           + sample(y0 + 1, x0) * (ly * (1 - lx))[:, None]
           + sample(y0 + 1, x0 + 1) * (ly * lx)[:, None])            # (N,C,K2,Ho,Wo)
    val = val * mask[:, None]
    out = jnp.einsum('ock,nckhw->nohw', weight.reshape(Cout, C, K2), val)
    return out + bias.reshape(1, -1, 1, 1)


def _pack_forward_ref(x, weight, bias, off_w, off_b, stride=1, padding=0,
                      dilation=1):
    kh, kw = weight.shape[2], weight.shape[3]
    off_y, off_x, mask = _predict_offsets(x, off_w, off_b, kh, kw, stride, padding)
    return _modulated_deform_conv_ref(x, off_y, off_x, mask, weight, bias,
                                      stride, padding, dilation)


# --------------------------------- main ------------------------------------ #

if __name__ == "__main__":
    key = jax.random.PRNGKey(0)
    N, Cin, H, W = 2, 4, 16, 16
    Cout, k = 8, 3
    stride, padding, dilation = 1, 1, 1
    K2 = k * k

    kx, kwt, kb, ko1, ko2, kx2, kw2, kb2 = jax.random.split(key, 8)
    x = jax.random.normal(kx, (N, Cin, H, W), jnp.float32)

    # ModulatedDeformConv.reset_parameters: uniform(-stdv, stdv), bias zeroed;
    # use a non-zero bias here to exercise the bias path.
    stdv = 1.0 / math.sqrt(Cin * k * k)
    weight = jax.random.uniform(kwt, (Cout, Cin, k, k), jnp.float32, -stdv, stdv)
    bias = 0.1 * jax.random.normal(kb, (Cout,), jnp.float32)

    fwd = jax.jit(functools.partial(modulated_deform_conv_pack_forward,
                                    stride=stride, padding=padding,
                                    dilation=dilation))

    # 1) init_offset(): conv_offset weight/bias zero -> offsets 0, mask = 0.5
    #    => output must equal 0.5 * plain_conv(x, weight) + bias.
    off_w0 = jnp.zeros((3 * K2, Cin, k, k), jnp.float32)
    off_b0 = jnp.zeros((3 * K2,), jnp.float32)
    out0 = jax.block_until_ready(fwd(x, weight, bias, off_w0, off_b0))
    assert out0.shape == (N, Cout, H, W)
    plain = jax.lax.conv_general_dilated(
        x, weight, window_strides=(1, 1), padding=[(1, 1), (1, 1)],
        dimension_numbers=('NCHW', 'OIHW', 'NCHW'))
    ref0 = 0.5 * plain + bias.reshape(1, -1, 1, 1)
    err0 = float(jnp.max(jnp.abs(out0 - ref0)))
    assert jnp.allclose(out0, ref0, atol=5e-2, rtol=5e-2), err0

    # 2) "trained" conv_offset (non-zero): genuinely deformable + modulated
    #    path, checked against an independent bilinear-gather reference.
    off_w = 0.3 * jax.random.normal(ko1, (3 * K2, Cin, k, k), jnp.float32)
    off_b = 0.1 * jax.random.normal(ko2, (3 * K2,), jnp.float32)
    out1 = jax.block_until_ready(fwd(x, weight, bias, off_w, off_b))
    ref1 = _pack_forward_ref(x, weight, bias, off_w, off_b,
                             stride, padding, dilation)
    err1 = float(jnp.max(jnp.abs(out1 - ref1)))
    assert jnp.allclose(out1, ref1, atol=5e-2, rtol=5e-2), err1

    # 3) small-TQ run (multi-tile grid) plus odd shapes: exercises the per-tile
    #    scalar interleaving, Q padding and Cout padding paths.
    fwd_small = jax.jit(functools.partial(modulated_deform_conv_pack_forward,
                                          stride=1, padding=1, dilation=1,
                                          max_tq=128))
    out2 = jax.block_until_ready(fwd_small(x, weight, bias, off_w, off_b))
    err2 = float(jnp.max(jnp.abs(out2 - ref1)))
    assert jnp.allclose(out2, ref1, atol=5e-2, rtol=5e-2), err2

    x3 = jax.random.normal(kx2, (1, 3, 10, 10), jnp.float32)
    w3_ = jax.random.uniform(kw2, (5, 3, 3, 3), jnp.float32, -stdv, stdv)
    b3_ = 0.1 * jax.random.normal(kb2, (5,), jnp.float32)
    ow3 = 0.3 * jax.random.normal(ko1, (27, 3, 3, 3), jnp.float32)
    ob3 = 0.1 * jax.random.normal(ko2, (27,), jnp.float32)
    out3 = jax.block_until_ready(fwd(x3, w3_, b3_, ow3, ob3))
    ref3 = _pack_forward_ref(x3, w3_, b3_, ow3, ob3, 1, 1, 1)
    err3 = float(jnp.max(jnp.abs(out3 - ref3)))
    assert out3.shape == (1, 5, 10, 10)
    assert jnp.allclose(out3, ref3, atol=5e-2, rtol=5e-2), err3

    print("KERNEL_OK")
</pallas_src>

<mosaic_0001>
module attributes {stable_mosaic.version = 11 : i64} {
  func.func @_mdconv_kernel(%arg0: i32, %arg1: i32, %arg2: memref<1x1x3x2304xf32, #tpu.memory_space<vmem>>, %arg3: memref<1x64x16xbf16, #tpu.memory_space<vmem>>, %arg4: memref<9x16x64xbf16, #tpu.memory_space<vmem>>, %arg5: memref<16x1xf32, #tpu.memory_space<vmem>>, %arg6: memref<1x16x256xf32, #tpu.memory_space<vmem>>) attributes {dimension_semantics = [#tpu.dimension_semantics<parallel>, #tpu.dimension_semantics<arbitrary>], iteration_bounds = array<i64: 2, 1>, scalar_prefetch = 0 : i64, scratch_operands = 0 : i64, tpu.core_type = #tpu.core_type<tc>, window_params = [{transform_indices = @transform_0, window_bounds = array<i64: 1, 1, 3, 2304>}, {transform_indices = @transform_1, window_bounds = array<i64: 1, 64, 16>}, {pipeline_mode = #tpu.pipeline_mode<synchronous>, transform_indices = @transform_2, window_bounds = array<i64: 9, 16, 64>}, {pipeline_mode = #tpu.pipeline_mode<synchronous>, transform_indices = @transform_3, window_bounds = array<i64: 16, 1>}, {transform_indices = @transform_4, window_bounds = array<i64: 1, 16, 256>}]} {
    %c0 = arith.constant 0 : index
    %c0_0 = arith.constant 0 : index
    %c0_1 = arith.constant 0 : index
    %0 = vector.load %arg3[%c0, %c0_0, %c0_1] : memref<1x64x16xbf16, #tpu.memory_space<vmem>>, vector<1x64x16xbf16>
    %1 = vector.shape_cast %0 : vector<1x64x16xbf16> to vector<64x16xbf16>
    %c0_2 = arith.constant 0 : index
    %c0_3 = arith.constant 0 : index
    %c0_4 = arith.constant 0 : index
    %c0_5 = arith.constant 0 : index
    %2 = vector.load %arg2[%c0_2, %c0_3, %c0_4, %c0_5] : memref<1x1x3x2304xf32, #tpu.memory_space<vmem>>, vector<1x1x1x2304xf32>
    %3 = vector.shape_cast %2 : vector<1x1x1x2304xf32> to vector<1x2304xf32>
    %c0_6 = arith.constant 0 : index
    %c0_7 = arith.constant 0 : index
    %c1 = arith.constant 1 : index
    %c0_8 = arith.constant 0 : index
    %4 = vector.load %arg2[%c0_6, %c0_7, %c1, %c0_8] : memref<1x1x3x2304xf32, #tpu.memory_space<vmem>>, vector<1x1x1x2304xf32>
    %5 = vector.shape_cast %4 : vector<1x1x1x2304xf32> to vector<1x2304xf32>
    %c0_9 = arith.constant 0 : index
    %c0_10 = arith.constant 0 : index
    %c2 = arith.constant 2 : index
    %c0_11 = arith.constant 0 : index
    %6 = vector.load %arg2[%c0_9, %c0_10, %c2, %c0_11] : memref<1x1x3x2304xf32, #tpu.memory_space<vmem>>, vector<1x1x1x2304xf32>
    %7 = vector.shape_cast %6 : vector<1x1x1x2304xf32> to vector<1x2304xf32>
    %8 = tpu.iota {dimensions = array<i32: 0>} : vector<16x1xi32>
    %9 = arith.sitofp %8 : vector<16x1xi32> to vector<16x1xf32>
    %10 = vector.broadcast %3 : vector<1x2304xf32> to vector<16x2304xf32>
    %11 = vector.broadcast %9 : vector<16x1xf32> to vector<16x2304xf32>
    %12 = arith.subf %10, %11 : vector<16x2304xf32>
    %13 = math.absf %12 : vector<16x2304xf32>
    %cst = arith.constant 1.000000e+00 : f32
    %14 = vector.broadcast %cst : f32 to vector<16x2304xf32>
    %15 = arith.subf %14, %13 : vector<16x2304xf32>
    %cst_12 = arith.constant 0.000000e+00 : f32
    %16 = vector.broadcast %cst_12 : f32 to vector<16x2304xf32>
    %17 = arith.maximumf %16, %15 : vector<16x2304xf32>
    %18 = vector.broadcast %7 : vector<1x2304xf32> to vector<16x2304xf32>
    %19 = arith.mulf %17, %18 : vector<16x2304xf32>
    %20 = arith.truncf %19 : vector<16x2304xf32> to vector<16x2304xbf16>
    %cst_13 = arith.constant dense<0.000000e+00> : vector<64x2304xf32>
    %21 = tpu.matmul %1, %20, %cst_13 {dimension_numbers = #tpu.dot_dimension_numbers<[1], [0], [0], [1], [0, 0, 1, 1], [], []>} : vector<64x16xbf16>, vector<16x2304xbf16>, vector<64x2304xf32> -> vector<64x2304xf32>
    %22 = tpu.iota {dimensions = array<i32: 0>} : vector<64x1xi32>
    %c16_i32 = arith.constant 16 : i32
    %c0_i32 = arith.constant 0 : i32
    %23 = arith.cmpi eq, %c16_i32, %c0_i32 : i32
    %c1_i32 = arith.constant 1 : i32
    %24 = arith.select %23, %c1_i32, %c16_i32 : i32
    %25 = vector.broadcast %24 : i32 to vector<64x1xi32>
    %26 = arith.remsi %22, %25 : vector<64x1xi32>
    %c0_i32_14 = arith.constant 0 : i32
    %27 = vector.broadcast %c0_i32_14 : i32 to vector<64x1xi32>
    %28 = arith.cmpi ne, %26, %27 : vector<64x1xi32>
    %c0_i32_15 = arith.constant 0 : i32
    %29 = vector.broadcast %c0_i32_15 : i32 to vector<64x1xi32>
    %30 = arith.cmpi slt, %26, %29 : vector<64x1xi32>
    %c0_i32_16 = arith.constant 0 : i32
    %31 = arith.cmpi slt, %24, %c0_i32_16 : i32
    %32 = vector.broadcast %31 : i1 to vector<64x1xi1>
    %33 = vector.broadcast %32 : vector<64x1xi1> to vector<64x1xi1>
    %34 = arith.xori %30, %33 : vector<64x1xi1>
    %35 = arith.andi %34, %28 : vector<64x1xi1>
    %36 = vector.broadcast %24 : i32 to vector<64x1xi32>
    %37 = arith.addi %26, %36 : vector<64x1xi32>
    %38 = arith.select %35, %37, %26 : vector<64x1xi1>, vector<64x1xi32>
    %39 = arith.sitofp %38 : vector<64x1xi32> to vector<64x1xf32>
    %40 = vector.broadcast %5 : vector<1x2304xf32> to vector<64x2304xf32>
    %41 = vector.broadcast %39 : vector<64x1xf32> to vector<64x2304xf32>
    %42 = arith.subf %40, %41 : vector<64x2304xf32>
    %43 = math.absf %42 : vector<64x2304xf32>
    %cst_17 = arith.constant 1.000000e+00 : f32
    %44 = vector.broadcast %cst_17 : f32 to vector<64x2304xf32>
    %45 = arith.subf %44, %43 : vector<64x2304xf32>
    %cst_18 = arith.constant 0.000000e+00 : f32
    %46 = vector.broadcast %cst_18 : f32 to vector<64x2304xf32>
    %47 = arith.maximumf %46, %45 : vector<64x2304xf32>
    %48 = arith.mulf %21, %47 : vector<64x2304xf32>
    %49 = arith.truncf %48 : vector<64x2304xf32> to vector<64x2304xbf16>
    %c0_19 = arith.constant 0 : index
    %c0_20 = arith.constant 0 : index
    %c0_21 = arith.constant 0 : index
    %50 = vector.load %arg4[%c0_19, %c0_20, %c0_21] : memref<9x16x64xbf16, #tpu.memory_space<vmem>>, vector<1x16x64xbf16>
    %51 = vector.shape_cast %50 : vector<1x16x64xbf16> to vector<16x64xbf16>
    %52 = vector.extract_strided_slice %49 {offsets = [0, 0], sizes = [64, 256], strides = [1, 1]} : vector<64x2304xbf16> to vector<64x256xbf16>
    %cst_22 = arith.constant dense<0.000000e+00> : vector<16x256xf32>
    %53 = tpu.matmul %51, %52, %cst_22 {dimension_numbers = #tpu.dot_dimension_numbers<[1], [0], [0], [1], [0, 0, 1, 1], [], []>} : vector<16x64xbf16>, vector<64x256xbf16>, vector<16x256xf32> -> vector<16x256xf32>
    %c1_23 = arith.constant 1 : index
    %c0_24 = arith.constant 0 : index
    %c0_25 = arith.constant 0 : index
    %54 = vector.load %arg4[%c1_23, %c0_24, %c0_25] : memref<9x16x64xbf16, #tpu.memory_space<vmem>>, vector<1x16x64xbf16>
    %55 = vector.shape_cast %54 : vector<1x16x64xbf16> to vector<16x64xbf16>
    %56 = vector.extract_strided_slice %49 {offsets = [0, 256], sizes = [64, 256], strides = [1, 1]} : vector<64x2304xbf16> to vector<64x256xbf16>
    %cst_26 = arith.constant dense<0.000000e+00> : vector<16x256xf32>
    %57 = tpu.matmul %55, %56, %cst_26 {dimension_numbers = #tpu.dot_dimension_numbers<[1], [0], [0], [1], [0, 0, 1, 1], [], []>} : vector<16x64xbf16>, vector<64x256xbf16>, vector<16x256xf32> -> vector<16x256xf32>
    %58 = arith.addf %53, %57 : vector<16x256xf32>
    %c2_27 = arith.constant 2 : index
    %c0_28 = arith.constant 0 : index
    %c0_29 = arith.constant 0 : index
    %59 = vector.load %arg4[%c2_27, %c0_28, %c0_29] : memref<9x16x64xbf16, #tpu.memory_space<vmem>>, vector<1x16x64xbf16>
    %60 = vector.shape_cast %59 : vector<1x16x64xbf16> to vector<16x64xbf16>
    %61 = vector.extract_strided_slice %49 {offsets = [0, 512], sizes = [64, 256], strides = [1, 1]} : vector<64x2304xbf16> to vector<64x256xbf16>
    %cst_30 = arith.constant dense<0.000000e+00> : vector<16x256xf32>
    %62 = tpu.matmul %60, %61, %cst_30 {dimension_numbers = #tpu.dot_dimension_numbers<[1], [0], [0], [1], [0, 0, 1, 1], [], []>} : vector<16x64xbf16>, vector<64x256xbf16>, vector<16x256xf32> -> vector<16x256xf32>
    %63 = arith.addf %58, %62 : vector<16x256xf32>
    %c3 = arith.constant 3 : index
    %c0_31 = arith.constant 0 : index
    %c0_32 = arith.constant 0 : index
    %64 = vector.load %arg4[%c3, %c0_31, %c0_32] : memref<9x16x64xbf16, #tpu.memory_space<vmem>>, vector<1x16x64xbf16>
    %65 = vector.shape_cast %64 : vector<1x16x64xbf16> to vector<16x64xbf16>
    %66 = vector.extract_strided_slice %49 {offsets = [0, 768], sizes = [64, 256], strides = [1, 1]} : vector<64x2304xbf16> to vector<64x256xbf16>
    %cst_33 = arith.constant dense<0.000000e+00> : vector<16x256xf32>
    %67 = tpu.matmul %65, %66, %cst_33 {dimension_numbers = #tpu.dot_dimension_numbers<[1], [0], [0], [1], [0, 0, 1, 1], [], []>} : vector<16x64xbf16>, vector<64x256xbf16>, vector<16x256xf32> -> vector<16x256xf32>
    %68 = arith.addf %63, %67 : vector<16x256xf32>
    %c4 = arith.constant 4 : index
    %c0_34 = arith.constant 0 : index
    %c0_35 = arith.constant 0 : index
    %69 = vector.load %arg4[%c4, %c0_34, %c0_35] : memref<9x16x64xbf16, #tpu.memory_space<vmem>>, vector<1x16x64xbf16>
    %70 = vector.shape_cast %69 : vector<1x16x64xbf16> to vector<16x64xbf16>
    %71 = vector.extract_strided_slice %49 {offsets = [0, 1024], sizes = [64, 256], strides = [1, 1]} : vector<64x2304xbf16> to vector<64x256xbf16>
    %cst_36 = arith.constant dense<0.000000e+00> : vector<16x256xf32>
    %72 = tpu.matmul %70, %71, %cst_36 {dimension_numbers = #tpu.dot_dimension_numbers<[1], [0], [0], [1], [0, 0, 1, 1], [], []>} : vector<16x64xbf16>, vector<64x256xbf16>, vector<16x256xf32> -> vector<16x256xf32>
    %73 = arith.addf %68, %72 : vector<16x256xf32>
    %c5 = arith.constant 5 : index
    %c0_37 = arith.constant 0 : index
    %c0_38 = arith.constant 0 : index
    %74 = vector.load %arg4[%c5, %c0_37, %c0_38] : memref<9x16x64xbf16, #tpu.memory_space<vmem>>, vector<1x16x64xbf16>
    %75 = vector.shape_cast %74 : vector<1x16x64xbf16> to vector<16x64xbf16>
    %76 = vector.extract_strided_slice %49 {offsets = [0, 1280], sizes = [64, 256], strides = [1, 1]} : vector<64x2304xbf16> to vector<64x256xbf16>
    %cst_39 = arith.constant dense<0.000000e+00> : vector<16x256xf32>
    %77 = tpu.matmul %75, %76, %cst_39 {dimension_numbers = #tpu.dot_dimension_numbers<[1], [0], [0], [1], [0, 0, 1, 1], [], []>} : vector<16x64xbf16>, vector<64x256xbf16>, vector<16x256xf32> -> vector<16x256xf32>
    %78 = arith.addf %73, %77 : vector<16x256xf32>
    %c6 = arith.constant 6 : index
    %c0_40 = arith.constant 0 : index
    %c0_41 = arith.constant 0 : index
    %79 = vector.load %arg4[%c6, %c0_40, %c0_41] : memref<9x16x64xbf16, #tpu.memory_space<vmem>>, vector<1x16x64xbf16>
    %80 = vector.shape_cast %79 : vector<1x16x64xbf16> to vector<16x64xbf16>
    %81 = vector.extract_strided_slice %49 {offsets = [0, 1536], sizes = [64, 256], strides = [1, 1]} : vector<64x2304xbf16> to vector<64x256xbf16>
    %cst_42 = arith.constant dense<0.000000e+00> : vector<16x256xf32>
    %82 = tpu.matmul %80, %81, %cst_42 {dimension_numbers = #tpu.dot_dimension_numbers<[1], [0], [0], [1], [0, 0, 1, 1], [], []>} : vector<16x64xbf16>, vector<64x256xbf16>, vector<16x256xf32> -> vector<16x256xf32>
    %83 = arith.addf %78, %82 : vector<16x256xf32>
    %c7 = arith.constant 7 : index
    %c0_43 = arith.constant 0 : index
    %c0_44 = arith.constant 0 : index
    %84 = vector.load %arg4[%c7, %c0_43, %c0_44] : memref<9x16x64xbf16, #tpu.memory_space<vmem>>, vector<1x16x64xbf16>
    %85 = vector.shape_cast %84 : vector<1x16x64xbf16> to vector<16x64xbf16>
    %86 = vector.extract_strided_slice %49 {offsets = [0, 1792], sizes = [64, 256], strides = [1, 1]} : vector<64x2304xbf16> to vector<64x256xbf16>
    %cst_45 = arith.constant dense<0.000000e+00> : vector<16x256xf32>
    %87 = tpu.matmul %85, %86, %cst_45 {dimension_numbers = #tpu.dot_dimension_numbers<[1], [0], [0], [1], [0, 0, 1, 1], [], []>} : vector<16x64xbf16>, vector<64x256xbf16>, vector<16x256xf32> -> vector<16x256xf32>
    %88 = arith.addf %83, %87 : vector<16x256xf32>
    %c8 = arith.constant 8 : index
    %c0_46 = arith.constant 0 : index
    %c0_47 = arith.constant 0 : index
    %89 = vector.load %arg4[%c8, %c0_46, %c0_47] : memref<9x16x64xbf16, #tpu.memory_space<vmem>>, vector<1x16x64xbf16>
    %90 = vector.shape_cast %89 : vector<1x16x64xbf16> to vector<16x64xbf16>
    %91 = vector.extract_strided_slice %49 {offsets = [0, 2048], sizes = [64, 256], strides = [1, 1]} : vector<64x2304xbf16> to vector<64x256xbf16>
    %cst_48 = arith.constant dense<0.000000e+00> : vector<16x256xf32>
    %92 = tpu.matmul %90, %91, %cst_48 {dimension_numbers = #tpu.dot_dimension_numbers<[1], [0], [0], [1], [0, 0, 1, 1], [], []>} : vector<16x64xbf16>, vector<64x256xbf16>, vector<16x256xf32> -> vector<16x256xf32>
    %93 = arith.addf %88, %92 : vector<16x256xf32>
    %c0_49 = arith.constant 0 : index
    %c0_50 = arith.constant 0 : index
    %94 = vector.load %arg5[%c0_49, %c0_50] : memref<16x1xf32, #tpu.memory_space<vmem>>, vector<16x1xf32>
    %95 = vector.broadcast %94 : vector<16x1xf32> to vector<16x256xf32>
    %96 = arith.addf %93, %95 : vector<16x256xf32>
    %c0_51 = arith.constant 0 : index
    %c0_52 = arith.constant 0 : index
    %c0_53 = arith.constant 0 : index
    %97 = vector.load %arg6[%c0_51, %c0_52, %c0_53] : memref<1x16x256xf32, #tpu.memory_space<vmem>>, vector<1x16x256xf32>
    %98 = vector.shape_cast %97 : vector<1x16x256xf32> to vector<16x256xf32>
    %99 = vector.shape_cast %96 : vector<16x256xf32> to vector<1x16x256xf32>
    tpu.vector_store %arg6[%c0_51, %c0_52, %c0_53], %99 {strides = array<i32>} : memref<1x16x256xf32, #tpu.memory_space<vmem>>, vector<1x16x256xf32>,
    return
  }
  func.func @transform_0(%arg0: i32, %arg1: i32) -> (i32, i32, i32, i32) {
    %c0_i32 = arith.constant 0 : i32
    %c0_i32_0 = arith.constant 0 : i32
    %c0_i32_1 = arith.constant 0 : i32
    return %arg0, %arg1, %c0_i32, %c0_i32_0 : i32, i32, i32, i32
  }
  func.func @transform_1(%arg0: i32, %arg1: i32) -> (i32, i32, i32) {
    %c0_i32 = arith.constant 0 : i32
    %c0_i32_0 = arith.constant 0 : i32
    %c0_i32_1 = arith.constant 0 : i32
    return %arg0, %c0_i32, %c0_i32_0 : i32, i32, i32
  }
  func.func @transform_2(%arg0: i32, %arg1: i32) -> (i32, i32, i32) {
    %c0_i32 = arith.constant 0 : i32
    %c0_i32_0 = arith.constant 0 : i32
    %c0_i32_1 = arith.constant 0 : i32
    %c0_i32_2 = arith.constant 0 : i32
    return %c0_i32, %c0_i32_0, %c0_i32_1 : i32, i32, i32
  }
  func.func @transform_3(%arg0: i32, %arg1: i32) -> (i32, i32) {
    %c0_i32 = arith.constant 0 : i32
    %c0_i32_0 = arith.constant 0 : i32
    %c0_i32_1 = arith.constant 0 : i32
    return %c0_i32, %c0_i32_0 : i32, i32
  }
  func.func @transform_4(%arg0: i32, %arg1: i32) -> (i32, i32, i32) {
    %c0_i32 = arith.constant 0 : i32
    %c0_i32_0 = arith.constant 0 : i32
    return %arg0, %c0_i32, %arg1 : i32, i32, i32
  }
}

</mosaic_0001>

<llo_original>
// kernel: modulated_deform_conv_pack_forward.1
$region0: #{modulated_deform_conv_pack_forward.1}
  #allocation0 [shape = 'u32[]', space=smem, size = 0x4, offset = 0x4, fixed_abs, tag = 'smem constant byte address 0x4 - core index']
  #allocation1 [shape = 'u32[144,128]{1,0:T(1,128)}', space=vmem, size = 0x12000, scoped, tag = 'internal scratch']
  %s0 = inlined_call_operand.vmem [shape: f32[2,1,3,2304], index: 0, kind: input, shape index: {}]
  %s1 = inlined_call_operand.vmem [shape: bf16[2,64,16], index: 1, kind: input, shape index: {}]
  %s2 = inlined_call_operand.vmem [shape: bf16[9,16,64], index: 2, kind: input, shape index: {}]
  %s3 = inlined_call_operand.vmem [shape: f32[16,1], index: 3, kind: input, shape index: {}]
  %s4 = inlined_call_operand.vmem [shape: f32[2,16,256], index: 4, kind: output, shape index: {}]
  %s5 = sld [smem:[#allocation0]]
  $region49: #{modulated_deform_conv_pack_forward.1} parent=0
    _
  %s7 = ssub.s32 1, %s5
  %s8 = scalar_select 0, %s7, %s5
  loop: start=0, step=1, limit=4
  $region2: #{modulated_deform_conv_pack_forward.1} parent=0 // loop_pre_header
    _
  $region3: #{modulated_deform_conv_pack_forward.1} parent=0 // loop_header
    %s10 = sphi 0, %s14
    %p11 = scmp.ge.s32.totalorder %s10, 4
    %s17 = sphi 0, %s29
    %s18 = sphi 0, %s25
    %s19 = sphi 0, %s17
    %s20 = sphi 0, %s18
    %s21 = sphi 0, %s19
    %s22 = sphi 0, %s20
    %s34 = sphi 0, %s36
    %s37 = sphi 0, %s34
    %s38 = sphi 0, %s37
    %s54 = sphi 0, %s38
    %s60 = sphi 0, %s62
    %s63 = sphi 0, %s60
    %s64 = sphi 0, %s63
    %s80 = sphi 0, %s64
    %s84 = sphi 0, %s84
    %s86 = sphi 0, %s84
    %s87 = sphi 0, %s86
    %s101 = sphi 0, %s87
    %s105 = sphi 0, %s105
    %s107 = sphi 0, %s105
    %s108 = sphi 0, %s107
    %s122 = sphi 0, %s108
    %s130 = sphi 0, %s132
    %s133 = sphi 0, %s130
    %s134 = sphi 0, %s133
    %s150 = sphi 0, %s134
  $region4: #{modulated_deform_conv_pack_forward.1} parent=0 // loop_header_branch
    %13 = sbr.rel (%p11) target = $region8
  $region5: #{modulated_deform_conv_pack_forward.1} parent=0 // loop_body
    %s15 = ssub.s32 %s10, 1
    %s16 = ssub.s32 %s10, 2
    %s23 = sadd.s32 1, %s18
    %p24 = scmp.ge.s32.totalorder %s23, 1
    %s25 = scalar_select %p24, 0, %s23
    %s26 = sadd.s32 1, %s17
    %s27 = scalar_select %p24, %s26, %s17
    %p28 = scmp.ge.s32.totalorder %s27, 2
    %s29 = scalar_select %p28, 0, %s27
    %s30 = ssub.s32 %s17, %s29
    %s31 = ssub.s32 %s18, %s25
    %s32 = sor.u32 %s30, %s31
    %p33 = scmp.eq.s32.totalorder %s32, 0
    %s35 = sadd.s32 %s34, 1
    %s36 = scalar_select %p33, %s34, %s35
    %p39 = pneg %p33
    %p40 = scmp.eq.s32.totalorder %s10, 1
    %p41 = por %p39, %p40
    %p42 = scmp.ne.s32.totalorder %s34, %s37
    %p43 = scmp.eq.s32.totalorder %s10, 0
    %p44 = por %p42, %p43
    %p45 = scmp.ne.s32.totalorder %s34, %s37
    %p46 = scmp.eq.s32.totalorder %s15, 1
    %p47 = por %p45, %p46
    %p48 = scmp.ne.s32.totalorder %s37, %s38
    %p49 = scmp.eq.s32.totalorder %s15, 0
    %p50 = por %p48, %p49
    %p51 = scmp.ne.s32.totalorder %s37, %s38
    %p52 = scmp.eq.s32.totalorder %s16, 1
    %p53 = por %p51, %p52
    %p55 = scmp.ne.s32.totalorder %s38, %s54
    %p56 = scmp.eq.s32.totalorder %s16, 0
    %p57 = por %p55, %p56
    %s58 = ssub.s32 %s17, %s29
    %p59 = scmp.eq.s32.totalorder %s58, 0
    %s61 = sadd.s32 %s60, 1
    %s62 = scalar_select %p59, %s60, %s61
    %p65 = pneg %p59
    %p66 = scmp.eq.s32.totalorder %s10, 1
    %p67 = por %p65, %p66
    %p68 = scmp.ne.s32.totalorder %s60, %s63
    %p69 = scmp.eq.s32.totalorder %s10, 0
    %p70 = por %p68, %p69
    %p71 = scmp.ne.s32.totalorder %s60, %s63
    %p72 = scmp.eq.s32.totalorder %s15, 1
    %p73 = por %p71, %p72
    %p74 = scmp.ne.s32.totalorder %s63, %s64
    %p75 = scmp.eq.s32.totalorder %s15, 0
    %p76 = por %p74, %p75
    %p77 = scmp.ne.s32.totalorder %s63, %s64
    %p78 = scmp.eq.s32.totalorder %s16, 1
    %p79 = por %p77, %p78
    %p81 = scmp.ne.s32.totalorder %s64, %s80
    %p82 = scmp.eq.s32.totalorder %s16, 0
    %p83 = por %p81, %p82
    %s85 = sadd.s32 %s84, 1
    %p88 = scmp.eq.s32.totalorder %s10, 1
    %p89 = scmp.ne.s32.totalorder %s84, %s86
    %p90 = scmp.eq.s32.totalorder %s10, 0
    %p91 = por %p89, %p90
    %p92 = scmp.ne.s32.totalorder %s84, %s86
    %p93 = scmp.eq.s32.totalorder %s15, 1
    %p94 = por %p92, %p93
    %p95 = scmp.ne.s32.totalorder %s86, %s87
    %p96 = scmp.eq.s32.totalorder %s15, 0
    %p97 = por %p95, %p96
    %p98 = scmp.ne.s32.totalorder %s86, %s87
    %p99 = scmp.eq.s32.totalorder %s16, 1
    %p100 = por %p98, %p99
    %p102 = scmp.ne.s32.totalorder %s87, %s101
    %p103 = scmp.eq.s32.totalorder %s16, 0
    %p104 = por %p102, %p103
    %s106 = sadd.s32 %s105, 1
    %p109 = scmp.eq.s32.totalorder %s10, 1
    %p110 = scmp.ne.s32.totalorder %s105, %s107
    %p111 = scmp.eq.s32.totalorder %s10, 0
    %p112 = por %p110, %p111
    %p113 = scmp.ne.s32.totalorder %s105, %s107
    %p114 = scmp.eq.s32.totalorder %s15, 1
    %p115 = por %p113, %p114
    %p116 = scmp.ne.s32.totalorder %s107, %s108
    %p117 = scmp.eq.s32.totalorder %s15, 0
    %p118 = por %p116, %p117
    %p119 = scmp.ne.s32.totalorder %s107, %s108
    %p120 = scmp.eq.s32.totalorder %s16, 1
    %p121 = por %p119, %p120
    %p123 = scmp.ne.s32.totalorder %s108, %s122
    %p124 = scmp.eq.s32.totalorder %s16, 0
    %p125 = por %p123, %p124
    %s126 = ssub.s32 %s17, %s29
    %s127 = ssub.s32 %s18, %s25
    %s128 = sor.u32 %s126, %s127
    %p129 = scmp.eq.s32.totalorder %s128, 0
    %s131 = sadd.s32 %s130, 1
    %s132 = scalar_select %p129, %s130, %s131
    %p135 = pneg %p129
    %p136 = scmp.eq.s32.totalorder %s10, 1
    %p137 = por %p135, %p136
    %p138 = scmp.ne.s32.totalorder %s130, %s133
    %p139 = scmp.eq.s32.totalorder %s10, 0
    %p140 = por %p138, %p139
    %p141 = scmp.ne.s32.totalorder %s130, %s133
    %p142 = scmp.eq.s32.totalorder %s15, 1
    %p143 = por %p141, %p142
    %p144 = scmp.ne.s32.totalorder %s133, %s134
    %p145 = scmp.eq.s32.totalorder %s15, 0
    %p146 = por %p144, %p145
    %p147 = scmp.ne.s32.totalorder %s133, %s134
    %p148 = scmp.eq.s32.totalorder %s16, 1
    %p149 = por %p147, %p148
    %p151 = scmp.ne.s32.totalorder %s134, %s150
    %p152 = scmp.eq.s32.totalorder %s16, 0
    %p153 = por %p151, %p152
    %p154 = scmp.le.s32.totalorder 1, %s10
    %p155 = scmp.lt.s32.totalorder %s10, 3
    %p156 = pnand %p154, %p155
    %p157 = pneg %p156
    // Predicated region
    $region9: #{modulated_deform_conv_pack_forward.1} parent=5 // pred_check
      _
    $region10: #{modulated_deform_conv_pack_forward.1} parent=5 // pred_check_branch
      %159 = sbr.rel (%p156) target = $region12
    $region11: #{modulated_deform_conv_pack_forward.1} parent=5 // pred_region
      %s160 = ssub.s32 %s10, 1
      // Predicated region
      $region13: #{modulated_deform_conv_pack_forward.1} parent=11 // pred_check
        %p161 = pneg %p97
      $region14: #{modulated_deform_conv_pack_forward.1} parent=11 // pred_check_branch
        %163 = sbr.rel (%p161) target = $region16
      $region15: #{modulated_deform_conv_pack_forward.1} parent=11 // pred_region
        _
      $region16: #{modulated_deform_conv_pack_forward.1} parent=11 // pred_fallthru
        _
      // Predicated region
      $region17: #{modulated_deform_conv_pack_forward.1} parent=11 // pred_check
        %p164 = pneg %p118
      $region18: #{modulated_deform_conv_pack_forward.1} parent=11 // pred_check_branch
        %166 = sbr.rel (%p164) target = $region20
      $region19: #{modulated_deform_conv_pack_forward.1} parent=11 // pred_region
        _
      $region20: #{modulated_deform_conv_pack_forward.1} parent=11 // pred_fallthru
        _
    $region12: #{modulated_deform_conv_pack_forward.1} parent=5 // pred_fallthru
      _
    %p167 = scmp.lt.s32.totalorder %s10, 2
    // Predicated region
    $region21: #{modulated_deform_conv_pack_forward.1} parent=5 // pred_check
      %p168 = pneg %p167
    $region22: #{modulated_deform_conv_pack_forward.1} parent=5 // pred_check_branch
      %170 = sbr.rel (%p168) target = $region24
    $region23: #{modulated_deform_conv_pack_forward.1} parent=5 // pred_region
      // Predicated region
      $region25: #{modulated_deform_conv_pack_forward.1} parent=23 // pred_check
        %p171 = pneg %p44
      $region26: #{modulated_deform_conv_pack_forward.1} parent=23 // pred_check_branch
        %173 = sbr.rel (%p171) target = $region28
      $region27: #{modulated_deform_conv_pack_forward.1} parent=23 // pred_region
        %p174 = scmp.lt.s32.totalorder %s17, 1
        %s175 = scalar_select %p174, %s17, 1
        %p176 = scmp.lt.s32.totalorder %s18, 0
        %s177 = scalar_select %p176, %s18, 0
        %s178 = smul.addr %s177, 18
        %s179 = smul.addr %s175, 18
        %s180 = sadd.s32 %s178, %s179
        %s181 = smul.addr %s180, 4
        %s182 = scalar_lea.vmem %s0, %s181
      $region28: #{modulated_deform_conv_pack_forward.1} parent=23 // pred_fallthru
        _
      // Predicated region
      $region29: #{modulated_deform_conv_pack_forward.1} parent=23 // pred_check
        %p183 = pneg %p70
      $region30: #{modulated_deform_conv_pack_forward.1} parent=23 // pred_check_branch
        %185 = sbr.rel (%p183) target = $region32
      $region31: #{modulated_deform_conv_pack_forward.1} parent=23 // pred_region
        %p186 = scmp.lt.s32.totalorder %s17, 1
        %s187 = scalar_select %p186, %s17, 1
        %s188 = smul.addr %s187, 8
        %s189 = smul.addr %s188, 4
        %s190 = scalar_lea.vmem %s1, %s189
      $region32: #{modulated_deform_conv_pack_forward.1} parent=23 // pred_fallthru
        _
    $region24: #{modulated_deform_conv_pack_forward.1} parent=5 // pred_fallthru
      _
    %p191 = scmp.le.s32.totalorder 1, %s10
    %p192 = scmp.lt.s32.totalorder %s10, 3
    %p193 = pnand %p191, %p192
    %p194 = pneg %p193
    // Predicated region
    $region33: #{modulated_deform_conv_pack_forward.1} parent=5 // pred_check
      _
    $region34: #{modulated_deform_conv_pack_forward.1} parent=5 // pred_check_branch
      %196 = sbr.rel (%p193) target = $region36
    $region35: #{modulated_deform_conv_pack_forward.1} parent=5 // pred_region
      %s197 = ssub.s32 %s10, 1
      %p198 = scmp.lt.s32.totalorder %s19, 1
      %s199 = scalar_select %p198, %s19, 1
      %p200 = scmp.lt.s32.totalorder %s20, 0
      %s201 = scalar_select %p200, %s20, 0
      %s202 = smul.addr %s201, 18
      %s203 = smul.addr %s199, 18
      %s204 = sadd.s32 %s202, %s203
      %s205 = smul.addr %s204, 4
      %s206 = scalar_lea.vmem %s0, %s205
      %p207 = pneg %p50
      %p208 = pneg %p47
      %p209 = scmp.lt.s32.totalorder %s19, 1
      %s210 = scalar_select %p209, %s19, 1
      %s211 = smul.addr %s210, 8
      %s212 = smul.addr %s211, 4
      %s213 = scalar_lea.vmem %s1, %s212
      %p214 = pneg %p76
      %p215 = pneg %p73
      %p216 = pneg %p97
      %p217 = pneg %p94
      %p218 = pneg %p118
      %p219 = pneg %p115
      %p220 = pneg %p146
      %p221 = pneg %p143
      %s222 = smul.u32 2, %s20
      %p223 = scmp.lt.s32.totalorder %s19, 1
      %s224 = scalar_select %p223, %s19, 1
      %p225 = scmp.lt.s32.totalorder %s222, 1
      %s226 = scalar_select %p225, %s222, 1
      %s227 = smul.addr %s224, 4
      %s228 = sadd.s32 %s226, %s227
      %s229 = smul.addr %s228, 8
      %s230 = scalar_lea.vmem %s4, %s229
      %p231 = scmp.lt.s32.totalorder %s19, 1
      %s232 = scalar_select %p231, %s19, 1
      %p233 = scmp.lt.s32.totalorder %s20, 0
      %s234 = scalar_select %p233, %s20, 0
      %s235 = smul.addr %s234, 18
      %s236 = smul.addr %s232, 18
      %s237 = sadd.s32 %s235, %s236
      %s238 = smul.addr %s237, 4
      %s239 = scalar_lea.vmem %s0, %s238
      %p240 = scmp.lt.s32.totalorder %s19, 1
      %s241 = scalar_select %p240, %s19, 1
      %s242 = smul.addr %s241, 8
      %s243 = smul.addr %s242, 4
      %s244 = scalar_lea.vmem %s1, %s243
      %s245 = smul.u32 2, %s20
      %p246 = scmp.lt.s32.totalorder %s19, 1
      %s247 = scalar_select %p246, %s19, 1
      %p248 = scmp.lt.s32.totalorder %s245, 1
      %s249 = scalar_select %p248, %s245, 1
      %s250 = smul.addr %s247, 4
      %s251 = sadd.s32 %s249, %s250
      %s252 = smul.addr %s251, 8
      %s253 = scalar_lea.vmem %s4, %s252
      %s254 = smul.u32 2, %s20
      %v256 = vld [vmem:[%s244] sm:$0xf]
      %v257 = vld [vmem:[%s244 + $0x4] sm:$0xf]
      %v258 = vld [vmem:[%s244 + $0x8] sm:$0xf]
      %v259 = vld [vmem:[%s244 + $0xc] sm:$0xf]
      %v260 = vld [vmem:[%s244 + $0x10] sm:$0xf]
      %v261 = vld [vmem:[%s244 + $0x14] sm:$0xf]
      %v262 = vld [vmem:[%s244 + $0x18] sm:$0xf]
      %v263 = vld [vmem:[%s244 + $0x1c] sm:$0xf]
      %v264 = vld [vmem:[%s239] ss:$4 sm:$0xff]
      %s265 = scalar_lea.vmem %s239, 32
      %v266 = vld [vmem:[%s265] ss:$4 sm:$0xff]
      %s267 = scalar_lea.vmem %s239, 64
      %v268 = vld [vmem:[%s267] ss:$4 sm:$0x3]
      %s269 = scalar_lea.vmem %s239, 1
      %v270 = vld [vmem:[%s269] ss:$4 sm:$0xff]
      %s271 = scalar_lea.vmem %s239, 33
      %v272 = vld [vmem:[%s271] ss:$4 sm:$0xff]
      %s273 = scalar_lea.vmem %s239, 65
      %v274 = vld [vmem:[%s273] ss:$4 sm:$0x3]
      %s275 = scalar_lea.vmem %s239, 2
      %v276 = vld [vmem:[%s275] ss:$4 sm:$0xff]
      %s277 = scalar_lea.vmem %s239, 34
      %v278 = vld [vmem:[%s277] ss:$4 sm:$0xff]
      %s279 = scalar_lea.vmem %s239, 66
      %v280 = vld [vmem:[%s279] ss:$4 sm:$0x3]
      %v281 = vlaneseq
      %v282 = vshrl.u32 %v281, 7
      %v283 = vadd.s32 %v282, 8
      %v284 = vcvt.s32.f32 %v282
      %v285 = vcvt.s32.f32 %v283
      %v289 = vlaneseq
      %v290 = vshrl.u32 %v289, 7
      %v291 = vsub.s32 0, %v290
      %v292 = vrot.slane %v264, %v291
      %v293 = vlaneseq
      %v294 = vshrl.u32 %v293, 7
      %v295 = vsub.s32 1, %v294
      %v296 = vrot.slane %v264, %v295
      %v297 = vlaneseq
      %v298 = vshrl.u32 %v297, 7
      %v299 = vsub.s32 2, %v298
      %v300 = vrot.slane %v264, %v299
      %v301 = vlaneseq
      %v302 = vshrl.u32 %v301, 7
      %v303 = vsub.s32 3, %v302
      %v304 = vrot.slane %v264, %v303
      %v305 = vlaneseq
      %v306 = vshrl.u32 %v305, 7
      %v307 = vsub.s32 4, %v306
      %v308 = vrot.slane %v264, %v307
      %v309 = vlaneseq
      %v310 = vshrl.u32 %v309, 7
      %v311 = vsub.s32 5, %v310
      %v312 = vrot.slane %v264, %v311
      %v313 = vlaneseq
      %v314 = vshrl.u32 %v313, 7
      %v315 = vsub.s32 6, %v314
      %v316 = vrot.slane %v264, %v315
      %v317 = vlaneseq
      %v318 = vshrl.u32 %v317, 7
      %v319 = vsub.s32 7, %v318
      %v320 = vrot.slane %v264, %v319
      %v321 = vlaneseq
      %v322 = vshrl.u32 %v321, 7
      %v323 = vsub.s32 0, %v322
      %v324 = vrot.slane %v266, %v323
      %v325 = vlaneseq
      %v326 = vshrl.u32 %v325, 7
      %v327 = vsub.s32 1, %v326
      %v328 = vrot.slane %v266, %v327
      %v329 = vlaneseq
      %v330 = vshrl.u32 %v329, 7
      %v331 = vsub.s32 2, %v330
      %v332 = vrot.slane %v266, %v331
      %v333 = vlaneseq
      %v334 = vshrl.u32 %v333, 7
      %v335 = vsub.s32 3, %v334
      %v336 = vrot.slane %v266, %v335
      %v337 = vlaneseq
      %v338 = vshrl.u32 %v337, 7
      %v339 = vsub.s32 4, %v338
      %v340 = vrot.slane %v266, %v339
      %v341 = vlaneseq
      %v342 = vshrl.u32 %v341, 7
      %v343 = vsub.s32 5, %v342
      %v344 = vrot.slane %v266, %v343
      %v345 = vlaneseq
      %v346 = vshrl.u32 %v345, 7
      %v347 = vsub.s32 6, %v346
      %v348 = vrot.slane %v266, %v347
      %v349 = vlaneseq
      %v350 = vshrl.u32 %v349, 7
      %v351 = vsub.s32 7, %v350
      %v352 = vrot.slane %v266, %v351
      %v353 = vlaneseq
      %v354 = vshrl.u32 %v353, 7
      %v355 = vsub.s32 0, %v354
      %v356 = vrot.slane %v268, %v355
      %v357 = vlaneseq
      %v358 = vshrl.u32 %v357, 7
      %v359 = vsub.s32 1, %v358
      %v360 = vrot.slane %v268, %v359
      %v379 = vsub.f32 %v292, %v284
      %v380 = vsub.f32 %v296, %v284
      %v381 = vsub.f32 %v300, %v284
      %v382 = vsub.f32 %v304, %v284
      %v383 = vsub.f32 %v308, %v284
      %v384 = vsub.f32 %v312, %v284
      %v385 = vsub.f32 %v316, %v284
      %v386 = vsub.f32 %v320, %v284
      %v387 = vsub.f32 %v324, %v284
      %v388 = vsub.f32 %v328, %v284
      %v389 = vsub.f32 %v332, %v284
      %v390 = vsub.f32 %v336, %v284
      %v391 = vsub.f32 %v340, %v284
      %v392 = vsub.f32 %v344, %v284
      %v393 = vsub.f32 %v348, %v284
      %v394 = vsub.f32 %v352, %v284
      %v395 = vsub.f32 %v356, %v284
      %v396 = vsub.f32 %v360, %v284
      %v397 = vsub.f32 %v292, %v285
      %v398 = vsub.f32 %v296, %v285
      %v399 = vsub.f32 %v300, %v285
      %v400 = vsub.f32 %v304, %v285
      %v401 = vsub.f32 %v308, %v285
      %v402 = vsub.f32 %v312, %v285
      %v403 = vsub.f32 %v316, %v285
      %v404 = vsub.f32 %v320, %v285
      %v405 = vsub.f32 %v324, %v285
      %v406 = vsub.f32 %v328, %v285
      %v407 = vsub.f32 %v332, %v285
      %v408 = vsub.f32 %v336, %v285
      %v409 = vsub.f32 %v340, %v285
      %v410 = vsub.f32 %v344, %v285
      %v411 = vsub.f32 %v348, %v285
      %v412 = vsub.f32 %v352, %v285
      %v413 = vsub.f32 %v356, %v285
      %v414 = vsub.f32 %v360, %v285
      %v415 = vand.u32 2147483647, %v379
      %v416 = vand.u32 2147483647, %v380
      %v417 = vand.u32 2147483647, %v381
      %v418 = vand.u32 2147483647, %v382
      %v419 = vand.u32 2147483647, %v383
      %v420 = vand.u32 2147483647, %v384
      %v421 = vand.u32 2147483647, %v385
      %v422 = vand.u32 2147483647, %v386
      %v423 = vand.u32 2147483647, %v387
      %v424 = vand.u32 2147483647, %v388
      %v425 = vand.u32 2147483647, %v389
      %v426 = vand.u32 2147483647, %v390
      %v427 = vand.u32 2147483647, %v391
      %v428 = vand.u32 2147483647, %v392
      %v429 = vand.u32 2147483647, %v393
      %v430 = vand.u32 2147483647, %v394
      %v431 = vand.u32 2147483647, %v395
      %v432 = vand.u32 2147483647, %v396
      %v433 = vand.u32 2147483647, %v397
      %v434 = vand.u32 2147483647, %v398
      %v435 = vand.u32 2147483647, %v399
      %v436 = vand.u32 2147483647, %v400
      %v437 = vand.u32 2147483647, %v401
      %v438 = vand.u32 2147483647, %v402
      %v439 = vand.u32 2147483647, %v403
      %v440 = vand.u32 2147483647, %v404
      %v441 = vand.u32 2147483647, %v405
      %v442 = vand.u32 2147483647, %v406
      %v443 = vand.u32 2147483647, %v407
      %v444 = vand.u32 2147483647, %v408
      %v445 = vand.u32 2147483647, %v409
      %v446 = vand.u32 2147483647, %v410
      %v447 = vand.u32 2147483647, %v411
      %v448 = vand.u32 2147483647, %v412
      %v449 = vand.u32 2147483647, %v413
      %v450 = vand.u32 2147483647, %v414
      %v451 = vsub.f32 1.0, %v415
      %v452 = vsub.f32 1.0, %v416
      %v453 = vsub.f32 1.0, %v417
      %v454 = vsub.f32 1.0, %v418
      %v455 = vsub.f32 1.0, %v419
      %v456 = vsub.f32 1.0, %v420
      %v457 = vsub.f32 1.0, %v421
      %v458 = vsub.f32 1.0, %v422
      %v459 = vsub.f32 1.0, %v423
      %v460 = vsub.f32 1.0, %v424
      %v461 = vsub.f32 1.0, %v425
      %v462 = vsub.f32 1.0, %v426
      %v463 = vsub.f32 1.0, %v427
      %v464 = vsub.f32 1.0, %v428
      %v465 = vsub.f32 1.0, %v429
      %v466 = vsub.f32 1.0, %v430
      %v467 = vsub.f32 1.0, %v431
      %v468 = vsub.f32 1.0, %v432
      %v469 = vsub.f32 1.0, %v433
      %v470 = vsub.f32 1.0, %v434
      %v471 = vsub.f32 1.0, %v435
      %v472 = vsub.f32 1.0, %v436
      %v473 = vsub.f32 1.0, %v437
      %v474 = vsub.f32 1.0, %v438
      %v475 = vsub.f32 1.0, %v439
      %v476 = vsub.f32 1.0, %v440
      %v477 = vsub.f32 1.0, %v441
      %v478 = vsub.f32 1.0, %v442
      %v479 = vsub.f32 1.0, %v443
      %v480 = vsub.f32 1.0, %v444
      %v481 = vsub.f32 1.0, %v445
      %v482 = vsub.f32 1.0, %v446
      %v483 = vsub.f32 1.0, %v447
      %v484 = vsub.f32 1.0, %v448
      %v485 = vsub.f32 1.0, %v449
      %v486 = vsub.f32 1.0, %v450
      %v487 = vmax.f32 %v451, 0.0
      %v488 = vmax.f32 %v452, 0.0
      %v489 = vmax.f32 %v453, 0.0
      %v490 = vmax.f32 %v454, 0.0
      %v491 = vmax.f32 %v455, 0.0
      %v492 = vmax.f32 %v456, 0.0
      %v493 = vmax.f32 %v457, 0.0
      %v494 = vmax.f32 %v458, 0.0
      %v495 = vmax.f32 %v459, 0.0
      %v496 = vmax.f32 %v460, 0.0
      %v497 = vmax.f32 %v461, 0.0
      %v498 = vmax.f32 %v462, 0.0
      %v499 = vmax.f32 %v463, 0.0
      %v500 = vmax.f32 %v464, 0.0
      %v501 = vmax.f32 %v465, 0.0
      %v502 = vmax.f32 %v466, 0.0
      %v503 = vmax.f32 %v467, 0.0
      %v504 = vmax.f32 %v468, 0.0
      %v505 = vmax.f32 %v469, 0.0
      %v506 = vmax.f32 %v470, 0.0
      %v507 = vmax.f32 %v471, 0.0
      %v508 = vmax.f32 %v472, 0.0
      %v509 = vmax.f32 %v473, 0.0
      %v510 = vmax.f32 %v474, 0.0
      %v511 = vmax.f32 %v475, 0.0
      %v512 = vmax.f32 %v476, 0.0
      %v513 = vmax.f32 %v477, 0.0
      %v514 = vmax.f32 %v478, 0.0
      %v515 = vmax.f32 %v479, 0.0
      %v516 = vmax.f32 %v480, 0.0
      %v517 = vmax.f32 %v481, 0.0
      %v518 = vmax.f32 %v482, 0.0
      %v519 = vmax.f32 %v483, 0.0
      %v520 = vmax.f32 %v484, 0.0
      %v521 = vmax.f32 %v485, 0.0
      %v522 = vmax.f32 %v486, 0.0
      %v526 = vlaneseq
      %v527 = vshrl.u32 %v526, 7
      %v528 = vsub.s32 0, %v527
      %v529 = vrot.slane %v276, %v528
      %v530 = vlaneseq
      %v531 = vshrl.u32 %v530, 7
      %v532 = vsub.s32 1, %v531
      %v533 = vrot.slane %v276, %v532
      %v534 = vlaneseq
      %v535 = vshrl.u32 %v534, 7
      %v536 = vsub.s32 2, %v535
      %v537 = vrot.slane %v276, %v536
      %v538 = vlaneseq
      %v539 = vshrl.u32 %v538, 7
      %v540 = vsub.s32 3, %v539
      %v541 = vrot.slane %v276, %v540
      %v542 = vlaneseq
      %v543 = vshrl.u32 %v542, 7
      %v544 = vsub.s32 4, %v543
      %v545 = vrot.slane %v276, %v544
      %v546 = vlaneseq
      %v547 = vshrl.u32 %v546, 7
      %v548 = vsub.s32 5, %v547
      %v549 = vrot.slane %v276, %v548
      %v550 = vlaneseq
      %v551 = vshrl.u32 %v550, 7
      %v552 = vsub.s32 6, %v551
      %v553 = vrot.slane %v276, %v552
      %v554 = vlaneseq
      %v555 = vshrl.u32 %v554, 7
      %v556 = vsub.s32 7, %v555
      %v557 = vrot.slane %v276, %v556
      %v558 = vlaneseq
      %v559 = vshrl.u32 %v558, 7
      %v560 = vsub.s32 0, %v559
      %v561 = vrot.slane %v278, %v560
      %v562 = vlaneseq
      %v563 = vshrl.u32 %v562, 7
      %v564 = vsub.s32 1, %v563
      %v565 = vrot.slane %v278, %v564
      %v566 = vlaneseq
      %v567 = vshrl.u32 %v566, 7
      %v568 = vsub.s32 2, %v567
      %v569 = vrot.slane %v278, %v568
      %v570 = vlaneseq
      %v571 = vshrl.u32 %v570, 7
      %v572 = vsub.s32 3, %v571
      %v573 = vrot.slane %v278, %v572
      %v574 = vlaneseq
      %v575 = vshrl.u32 %v574, 7
      %v576 = vsub.s32 4, %v575
      %v577 = vrot.slane %v278, %v576
      %v578 = vlaneseq
      %v579 = vshrl.u32 %v578, 7
      %v580 = vsub.s32 5, %v579
      %v581 = vrot.slane %v278, %v580
      %v582 = vlaneseq
      %v583 = vshrl.u32 %v582, 7
      %v584 = vsub.s32 6, %v583
      %v585 = vrot.slane %v278, %v584
      %v586 = vlaneseq
      %v587 = vshrl.u32 %v586, 7
      %v588 = vsub.s32 7, %v587
      %v589 = vrot.slane %v278, %v588
      %v590 = vlaneseq
      %v591 = vshrl.u32 %v590, 7
      %v592 = vsub.s32 0, %v591
      %v593 = vrot.slane %v280, %v592
      %v594 = vlaneseq
      %v595 = vshrl.u32 %v594, 7
      %v596 = vsub.s32 1, %v595
      %v597 = vrot.slane %v280, %v596
      %v616 = vmul.f32 %v487, %v529
      %v617 = vmul.f32 %v488, %v533
      %v618 = vmul.f32 %v489, %v537
      %v619 = vmul.f32 %v490, %v541
      %v620 = vmul.f32 %v491, %v545
      %v621 = vmul.f32 %v492, %v549
      %v622 = vmul.f32 %v493, %v553
      %v623 = vmul.f32 %v494, %v557
      %v624 = vmul.f32 %v495, %v561
      %v625 = vmul.f32 %v496, %v565
      %v626 = vmul.f32 %v497, %v569
      %v627 = vmul.f32 %v498, %v573
      %v628 = vmul.f32 %v499, %v577
      %v629 = vmul.f32 %v500, %v581
      %v630 = vmul.f32 %v501, %v585
      %v631 = vmul.f32 %v502, %v589
      %v632 = vmul.f32 %v503, %v593
      %v633 = vmul.f32 %v504, %v597
      %v634 = vmul.f32 %v505, %v529
      %v635 = vmul.f32 %v506, %v533
      %v636 = vmul.f32 %v507, %v537
      %v637 = vmul.f32 %v508, %v541
      %v638 = vmul.f32 %v509, %v545
      %v639 = vmul.f32 %v510, %v549
      %v640 = vmul.f32 %v511, %v553
      %v641 = vmul.f32 %v512, %v557
      %v642 = vmul.f32 %v513, %v561
      %v643 = vmul.f32 %v514, %v565
      %v644 = vmul.f32 %v515, %v569
      %v645 = vmul.f32 %v516, %v573
      %v646 = vmul.f32 %v517, %v577
      %v647 = vmul.f32 %v518, %v581
      %v648 = vmul.f32 %v519, %v585
      %v649 = vmul.f32 %v520, %v589
      %v650 = vmul.f32 %v521, %v593
      %v651 = vmul.f32 %v522, %v597
      %v652 = vpack.c.bf16 %v634, %v616
      %v653 = vpack.c.bf16 %v635, %v617
      %v654 = vpack.c.bf16 %v636, %v618
      %v655 = vpack.c.bf16 %v637, %v619
      %v656 = vpack.c.bf16 %v638, %v620
      %v657 = vpack.c.bf16 %v639, %v621
      %v658 = vpack.c.bf16 %v640, %v622
      %v659 = vpack.c.bf16 %v641, %v623
      %v660 = vpack.c.bf16 %v642, %v624
      %v661 = vpack.c.bf16 %v643, %v625
      %v662 = vpack.c.bf16 %v644, %v626
      %v663 = vpack.c.bf16 %v645, %v627
      %v664 = vpack.c.bf16 %v646, %v628
      %v665 = vpack.c.bf16 %v647, %v629
      %v666 = vpack.c.bf16 %v648, %v630
      %v667 = vpack.c.bf16 %v649, %v631
      %v668 = vpack.c.bf16 %v650, %v632
      %v669 = vpack.c.bf16 %v651, %v633
      %v678 = vunpack.c.l.b16 %v256
      %v679 = vunpack.c.l.b16 %v257
      %v680 = vunpack.c.l.b16 %v258
      %v681 = vunpack.c.l.b16 %v259
      %v682 = vunpack.c.l.b16 %v260
      %v683 = vunpack.c.l.b16 %v261
      %v684 = vunpack.c.l.b16 %v262
      %v685 = vunpack.c.l.b16 %v263
      %v686 = vpack.c.b16 %v679, %v678
      %v687 = vpack.c.b16 %v681, %v680
      %v688 = vpack.c.b16 %v683, %v682
      %v689 = vpack.c.b16 %v685, %v684
      %vm690 = vcmask 130048
      %v692 = vsel %vm690, %v686, 0
      %v695 = vsel %vm690, %v687, 0
      %v698 = vsel %vm690, %v688, 0
      %v701 = vsel %vm690, %v689, 0
      %703 = vmatprep.subr.bf16.mxu0 0
      %704 = vmatpush1.bf16.msra.mxu0 0
      %705 = vmatprep.subr.bf16.mxu0 0
      %706 = vmatpush1.bf16.msra.mxu0 0
      %707 = vmatprep.subr.bf16.mxu0 0
      %708 = vmatpush1.bf16.msra.mxu0 0
      %709 = vmatprep.subr.bf16.mxu0 0
      %710 = vmatpush1.bf16.msra.mxu0 0
      %711 = vmatprep.subr.bf16.mxu0 0
      %712 = vmatpush1.bf16.msra.mxu0 0
      %713 = vmatprep.subr.bf16.mxu0 0
      %714 = vmatpush1.bf16.msra.mxu0 0
      %715 = vmatprep.subr.bf16.mxu0 0
      %716 = vmatpush1.bf16.msra.mxu0 0
      %717 = vmatprep.subr.bf16.mxu0 %v653
      %718 = vmatpush1.bf16.msra.mxu0 %v652
      %719 = vmatprep.subr.bf16.mxu0 0
      %720 = vmatpush2.bf16.msra.mxu0 0
      %721 = vmatprep.subr.bf16.mxu0 0
      %722 = vmatpush2.bf16.msra.mxu0 0
      %723 = vmatprep.subr.bf16.mxu0 0
      %724 = vmatpush2.bf16.msra.mxu0 0
      %725 = vmatprep.subr.bf16.mxu0 0
      %726 = vmatpush2.bf16.msra.mxu0 0
      %727 = vmatprep.subr.bf16.mxu0 0
      %728 = vmatpush2.bf16.msra.mxu0 0
      %729 = vmatprep.subr.bf16.mxu0 0
      %730 = vmatpush2.bf16.msra.mxu0 0
      %731 = vmatprep.subr.bf16.mxu0 0
      %732 = vmatpush2.bf16.msra.mxu0 0
      %733 = vmatprep.subr.bf16.mxu0 0
      %734 = vmatpush2.bf16.msra.mxu0 0
      %735 = vmatprep.mubr.bf16.mxu0 0
      %736 = vmatmul.mubr.bf16.gmra.mxu0 %v692
      %v737 = vpop.f32.mrf.mxu0
      %v738 = vadd.f32 0.0, %v737
      %v739 = vpop.f32.mrf.mxu0
      %v740 = vadd.f32 0.0, %v739
      %v741 = vpop.f32.mrf.mxu0
      %v742 = vadd.f32 0.0, %v741
      %v743 = vpop.f32.mrf.mxu0
      %v744 = vadd.f32 0.0, %v743
      %745 = vmatprep.mubr.bf16.mxu0 0
      %746 = vmatmul.mubr.bf16.gmra.mxu0 %v695
      %v747 = vpop.f32.mrf.mxu0
      %v748 = vadd.f32 0.0, %v747
      %v749 = vpop.f32.mrf.mxu0
      %v750 = vadd.f32 0.0, %v749
      %v751 = vpop.f32.mrf.mxu0
      %v752 = vadd.f32 0.0, %v751
      %v753 = vpop.f32.mrf.mxu0
      %v754 = vadd.f32 0.0, %v753
      %755 = vmatprep.mubr.bf16.mxu0 0
      %756 = vmatmul.mubr.bf16.gmra.mxu0 %v698
      %v757 = vpop.f32.mrf.mxu0
      %v758 = vadd.f32 0.0, %v757
      %v759 = vpop.f32.mrf.mxu0
      %v760 = vadd.f32 0.0, %v759
      %v761 = vpop.f32.mrf.mxu0
      %v762 = vadd.f32 0.0, %v761
      %v763 = vpop.f32.mrf.mxu0
      %v764 = vadd.f32 0.0, %v763
      %765 = vmatprep.mubr.bf16.mxu0 0
      %766 = vmatmul.mubr.bf16.gmra.mxu0 %v701
      %v767 = vpop.f32.mrf.mxu0
      %v768 = vadd.f32 0.0, %v767
      %v769 = vpop.f32.mrf.mxu0
      %v770 = vadd.f32 0.0, %v769
      %v771 = vpop.f32.mrf.mxu0
      %v772 = vadd.f32 0.0, %v771
      %v773 = vpop.f32.mrf.mxu0
      %v774 = vadd.f32 0.0, %v773
      %775 = vdwg.mxu0
      %776 = vmatprep.subr.bf16.mxu0 0
      %777 = vmatpush1.bf16.msra.mxu0 0
      %778 = vmatprep.subr.bf16.mxu0 0
      %779 = vmatpush1.bf16.msra.mxu0 0
      %780 = vmatprep.subr.bf16.mxu0 0
      %781 = vmatpush1.bf16.msra.mxu0 0
      %782 = vmatprep.subr.bf16.mxu0 0
      %783 = vmatpush1.bf16.msra.mxu0 0
      %784 = vmatprep.subr.bf16.mxu0 0
      %785 = vmatpush1.bf16.msra.mxu0 0
      %786 = vmatprep.subr.bf16.mxu0 0
      %787 = vmatpush1.bf16.msra.mxu0 0
      %788 = vmatprep.subr.bf16.mxu0 0
      %789 = vmatpush1.bf16.msra.mxu0 0
      %790 = vmatprep.subr.bf16.mxu0 %v655
      %791 = vmatpush1.bf16.msra.mxu0 %v654
      %792 = vmatprep.subr.bf16.mxu0 0
      %793 = vmatpush2.bf16.msra.mxu0 0
      %794 = vmatprep.subr.bf16.mxu0 0
      %795 = vmatpush2.bf16.msra.mxu0 0
      %796 = vmatprep.subr.bf16.mxu0 0
      %797 = vmatpush2.bf16.msra.mxu0 0
      %798 = vmatprep.subr.bf16.mxu0 0
      %799 = vmatpush2.bf16.msra.mxu0 0
      %800 = vmatprep.subr.bf16.mxu0 0
      %801 = vmatpush2.bf16.msra.mxu0 0
      %802 = vmatprep.subr.bf16.mxu0 0
      %803 = vmatpush2.bf16.msra.mxu0 0
      %804 = vmatprep.subr.bf16.mxu0 0
      %805 = vmatpush2.bf16.msra.mxu0 0
      %806 = vmatprep.subr.bf16.mxu0 0
      %807 = vmatpush2.bf16.msra.mxu0 0
      %808 = vmatprep.mubr.bf16.mxu0 0
      %809 = vmatmul.mubr.bf16.gmra.mxu0 %v692
      %v810 = vpop.f32.mrf.mxu0
      %v811 = vadd.f32 0.0, %v810
      %v812 = vpop.f32.mrf.mxu0
      %v813 = vadd.f32 0.0, %v812
      %v814 = vpop.f32.mrf.mxu0
      %v815 = vadd.f32 0.0, %v814
      %v816 = vpop.f32.mrf.mxu0
      %v817 = vadd.f32 0.0, %v816
      %818 = vmatprep.mubr.bf16.mxu0 0
      %819 = vmatmul.mubr.bf16.gmra.mxu0 %v695
      %v820 = vpop.f32.mrf.mxu0
      %v821 = vadd.f32 0.0, %v820
      %v822 = vpop.f32.mrf.mxu0
      %v823 = vadd.f32 0.0, %v822
      %v824 = vpop.f32.mrf.mxu0
      %v825 = vadd.f32 0.0, %v824
      %v826 = vpop.f32.mrf.mxu0
      %v827 = vadd.f32 0.0, %v826
      %828 = vmatprep.mubr.bf16.mxu0 0
      %829 = vmatmul.mubr.bf16.gmra.mxu0 %v698
      %v830 = vpop.f32.mrf.mxu0
      %v831 = vadd.f32 0.0, %v830
      %v832 = vpop.f32.mrf.mxu0
      %v833 = vadd.f32 0.0, %v832
      %v834 = vpop.f32.mrf.mxu0
      %v835 = vadd.f32 0.0, %v834
      %v836 = vpop.f32.mrf.mxu0
      %v837 = vadd.f32 0.0, %v836
      %838 = vmatprep.mubr.bf16.mxu0 0
      %839 = vmatmul.mubr.bf16.gmra.mxu0 %v701
      %v840 = vpop.f32.mrf.mxu0
      %v841 = vadd.f32 0.0, %v840
      %v842 = vpop.f32.mrf.mxu0
      %v843 = vadd.f32 0.0, %v842
      %v844 = vpop.f32.mrf.mxu0
      %v845 = vadd.f32 0.0, %v844
      %v846 = vpop.f32.mrf.mxu0
      %v847 = vadd.f32 0.0, %v846
      %848 = vdwg.mxu0
      %849 = vmatprep.subr.bf16.mxu0 0
      %850 = vmatpush1.bf16.msra.mxu0 0
      %851 = vmatprep.subr.bf16.mxu0 0
      %852 = vmatpush1.bf16.msra.mxu0 0
      %853 = vmatprep.subr.bf16.mxu0 0
      %854 = vmatpush1.bf16.msra.mxu0 0
      %855 = vmatprep.subr.bf16.mxu0 0
      %856 = vmatpush1.bf16.msra.mxu0 0
      %857 = vmatprep.subr.bf16.mxu0 0
      %858 = vmatpush1.bf16.msra.mxu0 0
      %859 = vmatprep.subr.bf16.mxu0 0
      %860 = vmatpush1.bf16.msra.mxu0 0
      %861 = vmatprep.subr.bf16.mxu0 0
      %862 = vmatpush1.bf16.msra.mxu0 0
      %863 = vmatprep.subr.bf16.mxu0 %v657
      %864 = vmatpush1.bf16.msra.mxu0 %v656
      %865 = vmatprep.subr.bf16.mxu0 0
      %866 = vmatpush2.bf16.msra.mxu0 0
      %867 = vmatprep.subr.bf16.mxu0 0
      %868 = vmatpush2.bf16.msra.mxu0 0
      %869 = vmatprep.subr.bf16.mxu0 0
      %870 = vmatpush2.bf16.msra.mxu0 0
      %871 = vmatprep.subr.bf16.mxu0 0
      %872 = vmatpush2.bf16.msra.mxu0 0
      %873 = vmatprep.subr.bf16.mxu0 0
      %874 = vmatpush2.bf16.msra.mxu0 0
      %875 = vmatprep.subr.bf16.mxu0 0
      %876 = vmatpush2.bf16.msra.mxu0 0
      %877 = vmatprep.subr.bf16.mxu0 0
      %878 = vmatpush2.bf16.msra.mxu0 0
      %879 = vmatprep.subr.bf16.mxu0 0
      %880 = vmatpush2.bf16.msra.mxu0 0
      %881 = vmatprep.mubr.bf16.mxu0 0
      %882 = vmatmul.mubr.bf16.gmra.mxu0 %v692
      %v883 = vpop.f32.mrf.mxu0
      %v884 = vadd.f32 0.0, %v883
      %v885 = vpop.f32.mrf.mxu0
      %v886 = vadd.f32 0.0, %v885
      %v887 = vpop.f32.mrf.mxu0
      %v888 = vadd.f32 0.0, %v887
      %v889 = vpop.f32.mrf.mxu0
      %v890 = vadd.f32 0.0, %v889
      %891 = vmatprep.mubr.bf16.mxu0 0
      %892 = vmatmul.mubr.bf16.gmra.mxu0 %v695
      %v893 = vpop.f32.mrf.mxu0
      %v894 = vadd.f32 0.0, %v893
      %v895 = vpop.f32.mrf.mxu0
      %v896 = vadd.f32 0.0, %v895
      %v897 = vpop.f32.mrf.mxu0
      %v898 = vadd.f32 0.0, %v897
      %v899 = vpop.f32.mrf.mxu0
      %v900 = vadd.f32 0.0, %v899
      %901 = vmatprep.mubr.bf16.mxu0 0
      %902 = vmatmul.mubr.bf16.gmra.mxu0 %v698
      %v903 = vpop.f32.mrf.mxu0
      %v904 = vadd.f32 0.0, %v903
      %v905 = vpop.f32.mrf.mxu0
      %v906 = vadd.f32 0.0, %v905
      %v907 = vpop.f32.mrf.mxu0
      %v908 = vadd.f32 0.0, %v907
      %v909 = vpop.f32.mrf.mxu0
      %v910 = vadd.f32 0.0, %v909
      %911 = vmatprep.mubr.bf16.mxu0 0
      %912 = vmatmul.mubr.bf16.gmra.mxu0 %v701
      %v913 = vpop.f32.mrf.mxu0
      %v914 = vadd.f32 0.0, %v913
      %v915 = vpop.f32.mrf.mxu0
      %v916 = vadd.f32 0.0, %v915
      %v917 = vpop.f32.mrf.mxu0
      %v918 = vadd.f32 0.0, %v917
      %v919 = vpop.f32.mrf.mxu0
      %v920 = vadd.f32 0.0, %v919
      %921 = vdwg.mxu0
      %922 = vmatprep.subr.bf16.mxu0 0
      %923 = vmatpush1.bf16.msra.mxu0 0
      %924 = vmatprep.subr.bf16.mxu0 0
      %925 = vmatpush1.bf16.msra.mxu0 0
      %926 = vmatprep.subr.bf16.mxu0 0
      %927 = vmatpush1.bf16.msra.mxu0 0
      %928 = vmatprep.subr.bf16.mxu0 0
      %929 = vmatpush1.bf16.msra.mxu0 0
      %930 = vmatprep.subr.bf16.mxu0 0
      %931 = vmatpush1.bf16.msra.mxu0 0
      %932 = vmatprep.subr.bf16.mxu0 0
      %933 = vmatpush1.bf16.msra.mxu0 0
      %934 = vmatprep.subr.bf16.mxu0 0
      %935 = vmatpush1.bf16.msra.mxu0 0
      %936 = vmatprep.subr.bf16.mxu0 %v659
      %937 = vmatpush1.bf16.msra.mxu0 %v658
      %938 = vmatprep.subr.bf16.mxu0 0
      %939 = vmatpush2.bf16.msra.mxu0 0
      %940 = vmatprep.subr.bf16.mxu0 0
      %941 = vmatpush2.bf16.msra.mxu0 0
      %942 = vmatprep.subr.bf16.mxu0 0
      %943 = vmatpush2.bf16.msra.mxu0 0
      %944 = vmatprep.subr.bf16.mxu0 0
      %945 = vmatpush2.bf16.msra.mxu0 0
      %946 = vmatprep.subr.bf16.mxu0 0
      %947 = vmatpush2.bf16.msra.mxu0 0
      %948 = vmatprep.subr.bf16.mxu0 0
      %949 = vmatpush2.bf16.msra.mxu0 0
      %950 = vmatprep.subr.bf16.mxu0 0
      %951 = vmatpush2.bf16.msra.mxu0 0
      %952 = vmatprep.subr.bf16.mxu0 0
      %953 = vmatpush2.bf16.msra.mxu0 0
      %954 = vmatprep.mubr.bf16.mxu0 0
      %955 = vmatmul.mubr.bf16.gmra.mxu0 %v692
      %v956 = vpop.f32.mrf.mxu0
      %v957 = vadd.f32 0.0, %v956
      %v958 = vpop.f32.mrf.mxu0
      %v959 = vadd.f32 0.0, %v958
      %v960 = vpop.f32.mrf.mxu0
      %v961 = vadd.f32 0.0, %v960
      %v962 = vpop.f32.mrf.mxu0
      %v963 = vadd.f32 0.0, %v962
      %964 = vmatprep.mubr.bf16.mxu0 0
      %965 = vmatmul.mubr.bf16.gmra.mxu0 %v695
      %v966 = vpop.f32.mrf.mxu0
      %v967 = vadd.f32 0.0, %v966
      %v968 = vpop.f32.mrf.mxu0
      %v969 = vadd.f32 0.0, %v968
      %v970 = vpop.f32.mrf.mxu0
      %v971 = vadd.f32 0.0, %v970
      %v972 = vpop.f32.mrf.mxu0
      %v973 = vadd.f32 0.0, %v972
      %974 = vmatprep.mubr.bf16.mxu0 0
      %975 = vmatmul.mubr.bf16.gmra.mxu0 %v698
      %v976 = vpop.f32.mrf.mxu0
      %v977 = vadd.f32 0.0, %v976
      %v978 = vpop.f32.mrf.mxu0
      %v979 = vadd.f32 0.0, %v978
      %v980 = vpop.f32.mrf.mxu0
      %v981 = vadd.f32 0.0, %v980
      %v982 = vpop.f32.mrf.mxu0
      %v983 = vadd.f32 0.0, %v982
      %984 = vmatprep.mubr.bf16.mxu0 0
      %985 = vmatmul.mubr.bf16.gmra.mxu0 %v701
      %v986 = vpop.f32.mrf.mxu0
      %v987 = vadd.f32 0.0, %v986
      %v988 = vpop.f32.mrf.mxu0
      %v989 = vadd.f32 0.0, %v988
      %v990 = vpop.f32.mrf.mxu0
      %v991 = vadd.f32 0.0, %v990
      %v992 = vpop.f32.mrf.mxu0
      %v993 = vadd.f32 0.0, %v992
      %994 = vdwg.mxu0
      %995 = vmatprep.subr.bf16.mxu0 0
      %996 = vmatpush1.bf16.msra.mxu0 0
      %997 = vmatprep.subr.bf16.mxu0 0
      %998 = vmatpush1.bf16.msra.mxu0 0
      %999 = vmatprep.subr.bf16.mxu0 0
      %1000 = vmatpush1.bf16.msra.mxu0 0
      %1001 = vmatprep.subr.bf16.mxu0 0
      %1002 = vmatpush1.bf16.msra.mxu0 0
      %1003 = vmatprep.subr.bf16.mxu0 0
      %1004 = vmatpush1.bf16.msra.mxu0 0
      %1005 = vmatprep.subr.bf16.mxu0 0
      %1006 = vmatpush1.bf16.msra.mxu0 0
      %1007 = vmatprep.subr.bf16.mxu0 0
      %1008 = vmatpush1.bf16.msra.mxu0 0
      %1009 = vmatprep.subr.bf16.mxu0 %v661
      %1010 = vmatpush1.bf16.msra.mxu0 %v660
      %1011 = vmatprep.subr.bf16.mxu0 0
      %1012 = vmatpush2.bf16.msra.mxu0 0
      %1013 = vmatprep.subr.bf16.mxu0 0
      %1014 = vmatpush2.bf16.msra.mxu0 0
      %1015 = vmatprep.subr.bf16.mxu0 0
      %1016 = vmatpush2.bf16.msra.mxu0 0
      %1017 = vmatprep.subr.bf16.mxu0 0
      %1018 = vmatpush2.bf16.msra.mxu0 0
      %1019 = vmatprep.subr.bf16.mxu0 0
      %1020 = vmatpush2.bf16.msra.mxu0 0
      %1021 = vmatprep.subr.bf16.mxu0 0
      %1022 = vmatpush2.bf16.msra.mxu0 0
      %1023 = vmatprep.subr.bf16.mxu0 0
      %1024 = vmatpush2.bf16.msra.mxu0 0
      %1025 = vmatprep.subr.bf16.mxu0 0
      %1026 = vmatpush2.bf16.msra.mxu0 0
      %1027 = vmatprep.mubr.bf16.mxu0 0
      %1028 = vmatmul.mubr.bf16.gmra.mxu0 %v692
      %v1029 = vpop.f32.mrf.mxu0
      %v1030 = vadd.f32 0.0, %v1029
      %v1031 = vpop.f32.mrf.mxu0
      %v1032 = vadd.f32 0.0, %v1031
      %v1033 = vpop.f32.mrf.mxu0
      %v1034 = vadd.f32 0.0, %v1033
      %v1035 = vpop.f32.mrf.mxu0
      %v1036 = vadd.f32 0.0, %v1035
      %1037 = vmatprep.mubr.bf16.mxu0 0
      %1038 = vmatmul.mubr.bf16.gmra.mxu0 %v695
      %v1039 = vpop.f32.mrf.mxu0
      %v1040 = vadd.f32 0.0, %v1039
      %v1041 = vpop.f32.mrf.mxu0
      %v1042 = vadd.f32 0.0, %v1041
      %v1043 = vpop.f32.mrf.mxu0
      %v1044 = vadd.f32 0.0, %v1043
      %v1045 = vpop.f32.mrf.mxu0
      %v1046 = vadd.f32 0.0, %v1045
      %1047 = vmatprep.mubr.bf16.mxu0 0
      %1048 = vmatmul.mubr.bf16.gmra.mxu0 %v698
      %v1049 = vpop.f32.mrf.mxu0
      %v1050 = vadd.f32 0.0, %v1049
      %v1051 = vpop.f32.mrf.mxu0
      %v1052 = vadd.f32 0.0, %v1051
      %v1053 = vpop.f32.mrf.mxu0
      %v1054 = vadd.f32 0.0, %v1053
      %v1055 = vpop.f32.mrf.mxu0
      %v1056 = vadd.f32 0.0, %v1055
      %1057 = vmatprep.mubr.bf16.mxu0 0
      %1058 = vmatmul.mubr.bf16.gmra.mxu0 %v701
      %v1059 = vpop.f32.mrf.mxu0
      %v1060 = vadd.f32 0.0, %v1059
      %v1061 = vpop.f32.mrf.mxu0
      %v1062 = vadd.f32 0.0, %v1061
      %v1063 = vpop.f32.mrf.mxu0
      %v1064 = vadd.f32 0.0, %v1063
      %v1065 = vpop.f32.mrf.mxu0
      %v1066 = vadd.f32 0.0, %v1065
      %1067 = vdwg.mxu0
      %1068 = vmatprep.subr.bf16.mxu0 0
      %1069 = vmatpush1.bf16.msra.mxu0 0
      %1070 = vmatprep.subr.bf16.mxu0 0
      %1071 = vmatpush1.bf16.msra.mxu0 0
      %1072 = vmatprep.subr.bf16.mxu0 0
      %1073 = vmatpush1.bf16.msra.mxu0 0
      %1074 = vmatprep.subr.bf16.mxu0 0
      %1075 = vmatpush1.bf16.msra.mxu0 0
      %1076 = vmatprep.subr.bf16.mxu0 0
      %1077 = vmatpush1.bf16.msra.mxu0 0
      %1078 = vmatprep.subr.bf16.mxu0 0
      %1079 = vmatpush1.bf16.msra.mxu0 0
      %1080 = vmatprep.subr.bf16.mxu0 0
      %1081 = vmatpush1.bf16.msra.mxu0 0
      %1082 = vmatprep.subr.bf16.mxu0 %v663
      %1083 = vmatpush1.bf16.msra.mxu0 %v662
      %1084 = vmatprep.subr.bf16.mxu0 0
      %1085 = vmatpush2.bf16.msra.mxu0 0
      %1086 = vmatprep.subr.bf16.mxu0 0
      %1087 = vmatpush2.bf16.msra.mxu0 0
      %1088 = vmatprep.subr.bf16.mxu0 0
      %1089 = vmatpush2.bf16.msra.mxu0 0
      %1090 = vmatprep.subr.bf16.mxu0 0
      %1091 = vmatpush2.bf16.msra.mxu0 0
      %1092 = vmatprep.subr.bf16.mxu0 0
      %1093 = vmatpush2.bf16.msra.mxu0 0
      %1094 = vmatprep.subr.bf16.mxu0 0
      %1095 = vmatpush2.bf16.msra.mxu0 0
      %1096 = vmatprep.subr.bf16.mxu0 0
      %1097 = vmatpush2.bf16.msra.mxu0 0
      %1098 = vmatprep.subr.bf16.mxu0 0
      %1099 = vmatpush2.bf16.msra.mxu0 0
      %1100 = vmatprep.mubr.bf16.mxu0 0
      %1101 = vmatmul.mubr.bf16.gmra.mxu0 %v692
      %v1102 = vpop.f32.mrf.mxu0
      %v1103 = vadd.f32 0.0, %v1102
      %v1104 = vpop.f32.mrf.mxu0
      %v1105 = vadd.f32 0.0, %v1104
      %v1106 = vpop.f32.mrf.mxu0
      %v1107 = vadd.f32 0.0, %v1106
      %v1108 = vpop.f32.mrf.mxu0
      %v1109 = vadd.f32 0.0, %v1108
      %1110 = vmatprep.mubr.bf16.mxu0 0
      %1111 = vmatmul.mubr.bf16.gmra.mxu0 %v695
      %v1112 = vpop.f32.mrf.mxu0
      %v1113 = vadd.f32 0.0, %v1112
      %v1114 = vpop.f32.mrf.mxu0
      %v1115 = vadd.f32 0.0, %v1114
      %v1116 = vpop.f32.mrf.mxu0
      %v1117 = vadd.f32 0.0, %v1116
      %v1118 = vpop.f32.mrf.mxu0
      %v1119 = vadd.f32 0.0, %v1118
      %1120 = vmatprep.mubr.bf16.mxu0 0
      %1121 = vmatmul.mubr.bf16.gmra.mxu0 %v698
      %v1122 = vpop.f32.mrf.mxu0
      %v1123 = vadd.f32 0.0, %v1122
      %v1124 = vpop.f32.mrf.mxu0
      %v1125 = vadd.f32 0.0, %v1124
      %v1126 = vpop.f32.mrf.mxu0
      %v1127 = vadd.f32 0.0, %v1126
      %v1128 = vpop.f32.mrf.mxu0
      %v1129 = vadd.f32 0.0, %v1128
      %1130 = vmatprep.mubr.bf16.mxu0 0
      %1131 = vmatmul.mubr.bf16.gmra.mxu0 %v701
      %v1132 = vpop.f32.mrf.mxu0
      %v1133 = vadd.f32 0.0, %v1132
      %v1134 = vpop.f32.mrf.mxu0
      %v1135 = vadd.f32 0.0, %v1134
      %v1136 = vpop.f32.mrf.mxu0
      %v1137 = vadd.f32 0.0, %v1136
      %v1138 = vpop.f32.mrf.mxu0
      %v1139 = vadd.f32 0.0, %v1138
      %1140 = vdwg.mxu0
      %1141 = vmatprep.subr.bf16.mxu0 0
      %1142 = vmatpush1.bf16.msra.mxu0 0
      %1143 = vmatprep.subr.bf16.mxu0 0
      %1144 = vmatpush1.bf16.msra.mxu0 0
      %1145 = vmatprep.subr.bf16.mxu0 0
      %1146 = vmatpush1.bf16.msra.mxu0 0
      %1147 = vmatprep.subr.bf16.mxu0 0
      %1148 = vmatpush1.bf16.msra.mxu0 0
      %1149 = vmatprep.subr.bf16.mxu0 0
      %1150 = vmatpush1.bf16.msra.mxu0 0
      %1151 = vmatprep.subr.bf16.mxu0 0
      %1152 = vmatpush1.bf16.msra.mxu0 0
      %1153 = vmatprep.subr.bf16.mxu0 0
      %1154 = vmatpush1.bf16.msra.mxu0 0
      %1155 = vmatprep.subr.bf16.mxu0 %v665
      %1156 = vmatpush1.bf16.msra.mxu0 %v664
      %1157 = vmatprep.subr.bf16.mxu0 0
      %1158 = vmatpush2.bf16.msra.mxu0 0
      %1159 = vmatprep.subr.bf16.mxu0 0
      %1160 = vmatpush2.bf16.msra.mxu0 0
      %1161 = vmatprep.subr.bf16.mxu0 0
      %1162 = vmatpush2.bf16.msra.mxu0 0
      %1163 = vmatprep.subr.bf16.mxu0 0
      %1164 = vmatpush2.bf16.msra.mxu0 0
      %1165 = vmatprep.subr.bf16.mxu0 0
      %1166 = vmatpush2.bf16.msra.mxu0 0
      %1167 = vmatprep.subr.bf16.mxu0 0
      %1168 = vmatpush2.bf16.msra.mxu0 0
      %1169 = vmatprep.subr.bf16.mxu0 0
      %1170 = vmatpush2.bf16.msra.mxu0 0
      %1171 = vmatprep.subr.bf16.mxu0 0
      %1172 = vmatpush2.bf16.msra.mxu0 0
      %1173 = vmatprep.mubr.bf16.mxu0 0
      %1174 = vmatmul.mubr.bf16.gmra.mxu0 %v692
      %v1175 = vpop.f32.mrf.mxu0
      %v1176 = vadd.f32 0.0, %v1175
      %v1177 = vpop.f32.mrf.mxu0
      %v1178 = vadd.f32 0.0, %v1177
      %v1179 = vpop.f32.mrf.mxu0
      %v1180 = vadd.f32 0.0, %v1179
      %v1181 = vpop.f32.mrf.mxu0
      %v1182 = vadd.f32 0.0, %v1181
      %1183 = vmatprep.mubr.bf16.mxu0 0
      %1184 = vmatmul.mubr.bf16.gmra.mxu0 %v695
      %v1185 = vpop.f32.mrf.mxu0
      %v1186 = vadd.f32 0.0, %v1185
      %v1187 = vpop.f32.mrf.mxu0
      %v1188 = vadd.f32 0.0, %v1187
      %v1189 = vpop.f32.mrf.mxu0
      %v1190 = vadd.f32 0.0, %v1189
      %v1191 = vpop.f32.mrf.mxu0
      %v1192 = vadd.f32 0.0, %v1191
      %1193 = vmatprep.mubr.bf16.mxu0 0
      %1194 = vmatmul.mubr.bf16.gmra.mxu0 %v698
      %v1195 = vpop.f32.mrf.mxu0
      %v1196 = vadd.f32 0.0, %v1195
      %v1197 = vpop.f32.mrf.mxu0
      %v1198 = vadd.f32 0.0, %v1197
      %v1199 = vpop.f32.mrf.mxu0
      %v1200 = vadd.f32 0.0, %v1199
      %v1201 = vpop.f32.mrf.mxu0
      %v1202 = vadd.f32 0.0, %v1201
      %1203 = vmatprep.mubr.bf16.mxu0 0
      %1204 = vmatmul.mubr.bf16.gmra.mxu0 %v701
      %v1205 = vpop.f32.mrf.mxu0
      %v1206 = vadd.f32 0.0, %v1205
      %v1207 = vpop.f32.mrf.mxu0
      %v1208 = vadd.f32 0.0, %v1207
      %v1209 = vpop.f32.mrf.mxu0
      %v1210 = vadd.f32 0.0, %v1209
      %v1211 = vpop.f32.mrf.mxu0
      %v1212 = vadd.f32 0.0, %v1211
      %1213 = vdwg.mxu0
      %1214 = vmatprep.subr.bf16.mxu0 0
      %1215 = vmatpush1.bf16.msra.mxu0 0
      %1216 = vmatprep.subr.bf16.mxu0 0
      %1217 = vmatpush1.bf16.msra.mxu0 0
      %1218 = vmatprep.subr.bf16.mxu0 0
      %1219 = vmatpush1.bf16.msra.mxu0 0
      %1220 = vmatprep.subr.bf16.mxu0 0
      %1221 = vmatpush1.bf16.msra.mxu0 0
      %1222 = vmatprep.subr.bf16.mxu0 0
      %1223 = vmatpush1.bf16.msra.mxu0 0
      %1224 = vmatprep.subr.bf16.mxu0 0
      %1225 = vmatpush1.bf16.msra.mxu0 0
      %1226 = vmatprep.subr.bf16.mxu0 0
      %1227 = vmatpush1.bf16.msra.mxu0 0
      %1228 = vmatprep.subr.bf16.mxu0 %v667
      %1229 = vmatpush1.bf16.msra.mxu0 %v666
      %1230 = vmatprep.subr.bf16.mxu0 0
      %1231 = vmatpush2.bf16.msra.mxu0 0
      %1232 = vmatprep.subr.bf16.mxu0 0
      %1233 = vmatpush2.bf16.msra.mxu0 0
      %1234 = vmatprep.subr.bf16.mxu0 0
      %1235 = vmatpush2.bf16.msra.mxu0 0
      %1236 = vmatprep.subr.bf16.mxu0 0
      %1237 = vmatpush2.bf16.msra.mxu0 0
      %1238 = vmatprep.subr.bf16.mxu0 0
      %1239 = vmatpush2.bf16.msra.mxu0 0
      %1240 = vmatprep.subr.bf16.mxu0 0
      %1241 = vmatpush2.bf16.msra.mxu0 0
      %1242 = vmatprep.subr.bf16.mxu0 0
      %1243 = vmatpush2.bf16.msra.mxu0 0
      %1244 = vmatprep.subr.bf16.mxu0 0
      %1245 = vmatpush2.bf16.msra.mxu0 0
      %1246 = vmatprep.mubr.bf16.mxu0 0
      %1247 = vmatmul.mubr.bf16.gmra.mxu0 %v692
      %v1248 = vpop.f32.mrf.mxu0
      %v1249 = vadd.f32 0.0, %v1248
      %v1250 = vpop.f32.mrf.mxu0
      %v1251 = vadd.f32 0.0, %v1250
      %v1252 = vpop.f32.mrf.mxu0
      %v1253 = vadd.f32 0.0, %v1252
      %v1254 = vpop.f32.mrf.mxu0
      %v1255 = vadd.f32 0.0, %v1254
      %1256 = vmatprep.mubr.bf16.mxu0 0
      %1257 = vmatmul.mubr.bf16.gmra.mxu0 %v695
      %v1258 = vpop.f32.mrf.mxu0
      %v1259 = vadd.f32 0.0, %v1258
      %v1260 = vpop.f32.mrf.mxu0
      %v1261 = vadd.f32 0.0, %v1260
      %v1262 = vpop.f32.mrf.mxu0
      %v1263 = vadd.f32 0.0, %v1262
      %v1264 = vpop.f32.mrf.mxu0
      %v1265 = vadd.f32 0.0, %v1264
      %1266 = vmatprep.mubr.bf16.mxu0 0
      %1267 = vmatmul.mubr.bf16.gmra.mxu0 %v698
      %v1268 = vpop.f32.mrf.mxu0
      %v1269 = vadd.f32 0.0, %v1268
      %v1270 = vpop.f32.mrf.mxu0
      %v1271 = vadd.f32 0.0, %v1270
      %v1272 = vpop.f32.mrf.mxu0
      %v1273 = vadd.f32 0.0, %v1272
      %v1274 = vpop.f32.mrf.mxu0
      %v1275 = vadd.f32 0.0, %v1274
      %1276 = vmatprep.mubr.bf16.mxu0 0
      %1277 = vmatmul.mubr.bf16.gmra.mxu0 %v701
      %v1278 = vpop.f32.mrf.mxu0
      %v1279 = vadd.f32 0.0, %v1278
      %v1280 = vpop.f32.mrf.mxu0
      %v1281 = vadd.f32 0.0, %v1280
      %v1282 = vpop.f32.mrf.mxu0
      %v1283 = vadd.f32 0.0, %v1282
      %v1284 = vpop.f32.mrf.mxu0
      %v1285 = vadd.f32 0.0, %v1284
      %1286 = vdwg.mxu0
      %1287 = vmatprep.subr.bf16.mxu0 0
      %1288 = vmatpush1.bf16.msra.mxu0 0
      %1289 = vmatprep.subr.bf16.mxu0 0
      %1290 = vmatpush1.bf16.msra.mxu0 0
      %1291 = vmatprep.subr.bf16.mxu0 0
      %1292 = vmatpush1.bf16.msra.mxu0 0
      %1293 = vmatprep.subr.bf16.mxu0 0
      %1294 = vmatpush1.bf16.msra.mxu0 0
      %1295 = vmatprep.subr.bf16.mxu0 0
      %1296 = vmatpush1.bf16.msra.mxu0 0
      %1297 = vmatprep.subr.bf16.mxu0 0
      %1298 = vmatpush1.bf16.msra.mxu0 0
      %1299 = vmatprep.subr.bf16.mxu0 0
      %1300 = vmatpush1.bf16.msra.mxu0 0
      %1301 = vmatprep.subr.bf16.mxu0 %v669
      %1302 = vmatpush1.bf16.msra.mxu0 %v668
      %1303 = vmatprep.subr.bf16.mxu0 0
      %1304 = vmatpush2.bf16.msra.mxu0 0
      %1305 = vmatprep.subr.bf16.mxu0 0
      %1306 = vmatpush2.bf16.msra.mxu0 0
      %1307 = vmatprep.subr.bf16.mxu0 0
      %1308 = vmatpush2.bf16.msra.mxu0 0
      %1309 = vmatprep.subr.bf16.mxu0 0
      %1310 = vmatpush2.bf16.msra.mxu0 0
      %1311 = vmatprep.subr.bf16.mxu0 0
      %1312 = vmatpush2.bf16.msra.mxu0 0
      %1313 = vmatprep.subr.bf16.mxu0 0
      %1314 = vmatpush2.bf16.msra.mxu0 0
      %1315 = vmatprep.subr.bf16.mxu0 0
      %1316 = vmatpush2.bf16.msra.mxu0 0
      %1317 = vmatprep.subr.bf16.mxu0 0
      %1318 = vmatpush2.bf16.msra.mxu0 0
      %1319 = vmatprep.mubr.bf16.mxu0 0
      %1320 = vmatmul.mubr.bf16.gmra.mxu0 %v692
      %v1321 = vpop.f32.mrf.mxu0
      %v1322 = vadd.f32 0.0, %v1321
      %v1323 = vpop.f32.mrf.mxu0
      %v1324 = vadd.f32 0.0, %v1323
      %v1325 = vpop.f32.mrf.mxu0
      %v1326 = vadd.f32 0.0, %v1325
      %v1327 = vpop.f32.mrf.mxu0
      %v1328 = vadd.f32 0.0, %v1327
      %1329 = vmatprep.mubr.bf16.mxu0 0
      %1330 = vmatmul.mubr.bf16.gmra.mxu0 %v695
      %v1331 = vpop.f32.mrf.mxu0
      %v1332 = vadd.f32 0.0, %v1331
      %v1333 = vpop.f32.mrf.mxu0
      %v1334 = vadd.f32 0.0, %v1333
      %v1335 = vpop.f32.mrf.mxu0
      %v1336 = vadd.f32 0.0, %v1335
      %v1337 = vpop.f32.mrf.mxu0
      %v1338 = vadd.f32 0.0, %v1337
      %1339 = vmatprep.mubr.bf16.mxu0 0
      %1340 = vmatmul.mubr.bf16.gmra.mxu0 %v698
      %v1341 = vpop.f32.mrf.mxu0
      %v1342 = vadd.f32 0.0, %v1341
      %v1343 = vpop.f32.mrf.mxu0
      %v1344 = vadd.f32 0.0, %v1343
      %v1345 = vpop.f32.mrf.mxu0
      %v1346 = vadd.f32 0.0, %v1345
      %v1347 = vpop.f32.mrf.mxu0
      %v1348 = vadd.f32 0.0, %v1347
      %1349 = vmatprep.mubr.bf16.mxu0 0
      %1350 = vmatmul.mubr.bf16.gmra.mxu0 %v701
      %v1351 = vpop.f32.mrf.mxu0
      %v1352 = vadd.f32 0.0, %v1351
      %v1353 = vpop.f32.mrf.mxu0
      %v1354 = vadd.f32 0.0, %v1353
      %v1355 = vpop.f32.mrf.mxu0
      %v1356 = vadd.f32 0.0, %v1355
      %v1357 = vpop.f32.mrf.mxu0
      %v1358 = vadd.f32 0.0, %v1357
      %1359 = vdwg.mxu0
      %v1360 = vadd.s32 %v282, 16
      %v1361 = vadd.s32 %v282, 24
      %v1362 = vadd.s32 %v282, 32
      %v1363 = vadd.s32 %v282, 40
      %v1364 = vadd.s32 %v282, 48
      %v1365 = vadd.s32 %v282, 56
      %vm1366 = vcmp.lt.s32.totalorder %v282, 0
      %v1367 = vsub.s32 0, %v282
      %v1368 = vsel %vm1366, %v1367, %v282
      %v1369 = vshrl.u32 %v1368, 4
      %v1370 = vand.u32 %v1368, 15
      %v1371 = vsub.s32 0, %v1370
      %v1372 = vsel %vm1366, %v1371, %v1370
      %vm1373 = vcmp.lt.s32.totalorder %v283, 0
      %v1374 = vsub.s32 0, %v283
      %v1375 = vsel %vm1373, %v1374, %v283
      %v1376 = vshrl.u32 %v1375, 4
      %v1377 = vand.u32 %v1375, 15
      %v1378 = vsub.s32 0, %v1377
      %v1379 = vsel %vm1373, %v1378, %v1377
      %vm1380 = vcmp.lt.s32.totalorder %v1360, 0
      %v1381 = vsub.s32 0, %v1360
      %v1382 = vsel %vm1380, %v1381, %v1360
      %v1383 = vshrl.u32 %v1382, 4
      %v1384 = vand.u32 %v1382, 15
      %v1385 = vsub.s32 0, %v1384
      %v1386 = vsel %vm1380, %v1385, %v1384
      %vm1387 = vcmp.lt.s32.totalorder %v1361, 0
      %v1388 = vsub.s32 0, %v1361
      %v1389 = vsel %vm1387, %v1388, %v1361
      %v1390 = vshrl.u32 %v1389, 4
      %v1391 = vand.u32 %v1389, 15
      %v1392 = vsub.s32 0, %v1391
      %v1393 = vsel %vm1387, %v1392, %v1391
      %vm1394 = vcmp.lt.s32.totalorder %v1362, 0
      %v1395 = vsub.s32 0, %v1362
      %v1396 = vsel %vm1394, %v1395, %v1362
      %v1397 = vshrl.u32 %v1396, 4
      %v1398 = vand.u32 %v1396, 15
      %v1399 = vsub.s32 0, %v1398
      %v1400 = vsel %vm1394, %v1399, %v1398
      %vm1401 = vcmp.lt.s32.totalorder %v1363, 0
      %v1402 = vsub.s32 0, %v1363
      %v1403 = vsel %vm1401, %v1402, %v1363
      %v1404 = vshrl.u32 %v1403, 4
      %v1405 = vand.u32 %v1403, 15
      %v1406 = vsub.s32 0, %v1405
      %v1407 = vsel %vm1401, %v1406, %v1405
      %vm1408 = vcmp.lt.s32.totalorder %v1364, 0
      %v1409 = vsub.s32 0, %v1364
      %v1410 = vsel %vm1408, %v1409, %v1364
      %v1411 = vshrl.u32 %v1410, 4
      %v1412 = vand.u32 %v1410, 15
      %v1413 = vsub.s32 0, %v1412
      %v1414 = vsel %vm1408, %v1413, %v1412
      %vm1415 = vcmp.lt.s32.totalorder %v1365, 0
      %v1416 = vsub.s32 0, %v1365
      %v1417 = vsel %vm1415, %v1416, %v1365
      %v1418 = vshrl.u32 %v1417, 4
      %v1419 = vand.u32 %v1417, 15
      %v1420 = vsub.s32 0, %v1419
      %v1421 = vsel %vm1415, %v1420, %v1419
      %vm1422 = vcmp.ne.s32.totalorder %v1372, 0
      %vm1423 = vcmp.ne.s32.totalorder %v1379, 0
      %vm1424 = vcmp.ne.s32.totalorder %v1386, 0
      %vm1425 = vcmp.ne.s32.totalorder %v1393, 0
      %vm1426 = vcmp.ne.s32.totalorder %v1400, 0
      %vm1427 = vcmp.ne.s32.totalorder %v1407, 0
      %vm1428 = vcmp.ne.s32.totalorder %v1414, 0
      %vm1429 = vcmp.ne.s32.totalorder %v1421, 0
      %vm1430 = vcmp.lt.s32.totalorder %v1372, 0
      %vm1431 = vcmp.lt.s32.totalorder %v1379, 0
      %vm1432 = vcmp.lt.s32.totalorder %v1386, 0
      %vm1433 = vcmp.lt.s32.totalorder %v1393, 0
      %vm1434 = vcmp.lt.s32.totalorder %v1400, 0
      %vm1435 = vcmp.lt.s32.totalorder %v1407, 0
      %vm1436 = vcmp.lt.s32.totalorder %v1414, 0
      %vm1437 = vcmp.lt.s32.totalorder %v1421, 0
      %vm1438 = vmand %vm1430, %vm1422
      %vm1439 = vmand %vm1431, %vm1423
      %vm1440 = vmand %vm1432, %vm1424
      %vm1441 = vmand %vm1433, %vm1425
      %vm1442 = vmand %vm1434, %vm1426
      %vm1443 = vmand %vm1435, %vm1427
      %vm1444 = vmand %vm1436, %vm1428
      %vm1445 = vmand %vm1437, %vm1429
      %v1446 = vadd.s32 %v1372, 16
      %v1447 = vadd.s32 %v1379, 16
      %v1448 = vadd.s32 %v1386, 16
      %v1449 = vadd.s32 %v1393, 16
      %v1450 = vadd.s32 %v1400, 16
      %v1451 = vadd.s32 %v1407, 16
      %v1452 = vadd.s32 %v1414, 16
      %v1453 = vadd.s32 %v1421, 16
      %v1454 = vsel %vm1438, %v1446, %v1372
      %v1455 = vsel %vm1439, %v1447, %v1379
      %v1456 = vsel %vm1440, %v1448, %v1386
      %v1457 = vsel %vm1441, %v1449, %v1393
      %v1458 = vsel %vm1442, %v1450, %v1400
      %v1459 = vsel %vm1443, %v1451, %v1407
      %v1460 = vsel %vm1444, %v1452, %v1414
      %v1461 = vsel %vm1445, %v1453, %v1421
      %v1462 = vcvt.s32.f32 %v1454
      %v1463 = vcvt.s32.f32 %v1455
      %v1464 = vcvt.s32.f32 %v1456
      %v1465 = vcvt.s32.f32 %v1457
      %v1466 = vcvt.s32.f32 %v1458
      %v1467 = vcvt.s32.f32 %v1459
      %v1468 = vcvt.s32.f32 %v1460
      %v1469 = vcvt.s32.f32 %v1461
      %v1473 = vlaneseq
      %v1474 = vshrl.u32 %v1473, 7
      %v1475 = vsub.s32 0, %v1474
      %v1476 = vrot.slane %v270, %v1475
      %v1477 = vlaneseq
      %v1478 = vshrl.u32 %v1477, 7
      %v1479 = vsub.s32 1, %v1478
      %v1480 = vrot.slane %v270, %v1479
      %v1481 = vlaneseq
      %v1482 = vshrl.u32 %v1481, 7
      %v1483 = vsub.s32 2, %v1482
      %v1484 = vrot.slane %v270, %v1483
      %v1485 = vlaneseq
      %v1486 = vshrl.u32 %v1485, 7
      %v1487 = vsub.s32 3, %v1486
      %v1488 = vrot.slane %v270, %v1487
      %v1489 = vlaneseq
      %v1490 = vshrl.u32 %v1489, 7
      %v1491 = vsub.s32 4, %v1490
      %v1492 = vrot.slane %v270, %v1491
      %v1493 = vlaneseq
      %v1494 = vshrl.u32 %v1493, 7
      %v1495 = vsub.s32 5, %v1494
      %v1496 = vrot.slane %v270, %v1495
      %v1497 = vlaneseq
      %v1498 = vshrl.u32 %v1497, 7
      %v1499 = vsub.s32 6, %v1498
      %v1500 = vrot.slane %v270, %v1499
      %v1501 = vlaneseq
      %v1502 = vshrl.u32 %v1501, 7
      %v1503 = vsub.s32 7, %v1502
      %v1504 = vrot.slane %v270, %v1503
      %v1505 = vlaneseq
      %v1506 = vshrl.u32 %v1505, 7
      %v1507 = vsub.s32 0, %v1506
      %v1508 = vrot.slane %v272, %v1507
      %v1509 = vlaneseq
      %v1510 = vshrl.u32 %v1509, 7
      %v1511 = vsub.s32 1, %v1510
      %v1512 = vrot.slane %v272, %v1511
      %v1513 = vlaneseq
      %v1514 = vshrl.u32 %v1513, 7
      %v1515 = vsub.s32 2, %v1514
      %v1516 = vrot.slane %v272, %v1515
      %v1517 = vlaneseq
      %v1518 = vshrl.u32 %v1517, 7
      %v1519 = vsub.s32 3, %v1518
      %v1520 = vrot.slane %v272, %v1519
      %v1521 = vlaneseq
      %v1522 = vshrl.u32 %v1521, 7
      %v1523 = vsub.s32 4, %v1522
      %v1524 = vrot.slane %v272, %v1523
      %v1525 = vlaneseq
      %v1526 = vshrl.u32 %v1525, 7
      %v1527 = vsub.s32 5, %v1526
      %v1528 = vrot.slane %v272, %v1527
      %v1529 = vlaneseq
      %v1530 = vshrl.u32 %v1529, 7
      %v1531 = vsub.s32 6, %v1530
      %v1532 = vrot.slane %v272, %v1531
      %v1533 = vlaneseq
      %v1534 = vshrl.u32 %v1533, 7
      %v1535 = vsub.s32 7, %v1534
      %v1536 = vrot.slane %v272, %v1535
      %v1537 = vlaneseq
      %v1538 = vshrl.u32 %v1537, 7
      %v1539 = vsub.s32 0, %v1538
      %v1540 = vrot.slane %v274, %v1539
      %v1541 = vlaneseq
      %v1542 = vshrl.u32 %v1541, 7
      %v1543 = vsub.s32 1, %v1542
      %v1544 = vrot.slane %v274, %v1543
      %v1563 = vsub.f32 %v1476, %v1462
      %v1564 = vsub.f32 %v1480, %v1462
      %v1565 = vsub.f32 %v1484, %v1462
      %v1566 = vsub.f32 %v1488, %v1462
      %v1567 = vsub.f32 %v1492, %v1462
      %v1568 = vsub.f32 %v1496, %v1462
      %v1569 = vsub.f32 %v1500, %v1462
      %v1570 = vsub.f32 %v1504, %v1462
      %v1571 = vsub.f32 %v1508, %v1462
      %v1572 = vsub.f32 %v1512, %v1462
      %v1573 = vsub.f32 %v1516, %v1462
      %v1574 = vsub.f32 %v1520, %v1462
      %v1575 = vsub.f32 %v1524, %v1462
      %v1576 = vsub.f32 %v1528, %v1462
      %v1577 = vsub.f32 %v1532, %v1462
      %v1578 = vsub.f32 %v1536, %v1462
      %v1579 = vsub.f32 %v1540, %v1462
      %v1580 = vsub.f32 %v1544, %v1462
      %v1581 = vsub.f32 %v1476, %v1463
      %v1582 = vsub.f32 %v1480, %v1463
      %v1583 = vsub.f32 %v1484, %v1463
      %v1584 = vsub.f32 %v1488, %v1463
      %v1585 = vsub.f32 %v1492, %v1463
      %v1586 = vsub.f32 %v1496, %v1463
      %v1587 = vsub.f32 %v1500, %v1463
      %v1588 = vsub.f32 %v1504, %v1463
      %v1589 = vsub.f32 %v1508, %v1463
      %v1590 = vsub.f32 %v1512, %v1463
      %v1591 = vsub.f32 %v1516, %v1463
      %v1592 = vsub.f32 %v1520, %v1463
      %v1593 = vsub.f32 %v1524, %v1463
      %v1594 = vsub.f32 %v1528, %v1463
      %v1595 = vsub.f32 %v1532, %v1463
      %v1596 = vsub.f32 %v1536, %v1463
      %v1597 = vsub.f32 %v1540, %v1463
      %v1598 = vsub.f32 %v1544, %v1463
      %v1599 = vsub.f32 %v1476, %v1464
      %v1600 = vsub.f32 %v1480, %v1464
      %v1601 = vsub.f32 %v1484, %v1464
      %v1602 = vsub.f32 %v1488, %v1464
      %v1603 = vsub.f32 %v1492, %v1464
      %v1604 = vsub.f32 %v1496, %v1464
      %v1605 = vsub.f32 %v1500, %v1464
      %v1606 = vsub.f32 %v1504, %v1464
      %v1607 = vsub.f32 %v1508, %v1464
      %v1608 = vsub.f32 %v1512, %v1464
      %v1609 = vsub.f32 %v1516, %v1464
      %v1610 = vsub.f32 %v1520, %v1464
      %v1611 = vsub.f32 %v1524, %v1464
      %v1612 = vsub.f32 %v1528, %v1464
      %v1613 = vsub.f32 %v1532, %v1464
      %v1614 = vsub.f32 %v1536, %v1464
      %v1615 = vsub.f32 %v1540, %v1464
      %v1616 = vsub.f32 %v1544, %v1464
      %v1617 = vsub.f32 %v1476, %v1465
      %v1618 = vsub.f32 %v1480, %v1465
      %v1619 = vsub.f32 %v1484, %v1465
      %v1620 = vsub.f32 %v1488, %v1465
      %v1621 = vsub.f32 %v1492, %v1465
      %v1622 = vsub.f32 %v1496, %v1465
      %v1623 = vsub.f32 %v1500, %v1465
      %v1624 = vsub.f32 %v1504, %v1465
      %v1625 = vsub.f32 %v1508, %v1465
      %v1626 = vsub.f32 %v1512, %v1465
      %v1627 = vsub.f32 %v1516, %v1465
      %v1628 = vsub.f32 %v1520, %v1465
      %v1629 = vsub.f32 %v1524, %v1465
      %v1630 = vsub.f32 %v1528, %v1465
      %v1631 = vsub.f32 %v1532, %v1465
      %v1632 = vsub.f32 %v1536, %v1465
      %v1633 = vsub.f32 %v1540, %v1465
      %v1634 = vsub.f32 %v1544, %v1465
      %v1635 = vsub.f32 %v1476, %v1466
      %v1636 = vsub.f32 %v1480, %v1466
      %v1637 = vsub.f32 %v1484, %v1466
      %v1638 = vsub.f32 %v1488, %v1466
      %v1639 = vsub.f32 %v1492, %v1466
      %v1640 = vsub.f32 %v1496, %v1466
      %v1641 = vsub.f32 %v1500, %v1466
      %v1642 = vsub.f32 %v1504, %v1466
      %v1643 = vsub.f32 %v1508, %v1466
      %v1644 = vsub.f32 %v1512, %v1466
      %v1645 = vsub.f32 %v1516, %v1466
      %v1646 = vsub.f32 %v1520, %v1466
      %v1647 = vsub.f32 %v1524, %v1466
      %v1648 = vsub.f32 %v1528, %v1466
      %v1649 = vsub.f32 %v1532, %v1466
      %v1650 = vsub.f32 %v1536, %v1466
      %v1651 = vsub.f32 %v1540, %v1466
      %v1652 = vsub.f32 %v1544, %v1466
      %v1653 = vsub.f32 %v1476, %v1467
      %v1654 = vsub.f32 %v1480, %v1467
      %v1655 = vsub.f32 %v1484, %v1467
      %v1656 = vsub.f32 %v1488, %v1467
      %v1657 = vsub.f32 %v1492, %v1467
      %v1658 = vsub.f32 %v1496, %v1467
      %v1659 = vsub.f32 %v1500, %v1467
      %v1660 = vsub.f32 %v1504, %v1467
      %v1661 = vsub.f32 %v1508, %v1467
      %v1662 = vsub.f32 %v1512, %v1467
      %v1663 = vsub.f32 %v1516, %v1467
      %v1664 = vsub.f32 %v1520, %v1467
      %v1665 = vsub.f32 %v1524, %v1467
      %v1666 = vsub.f32 %v1528, %v1467
      %v1667 = vsub.f32 %v1532, %v1467
      %v1668 = vsub.f32 %v1536, %v1467
      %v1669 = vsub.f32 %v1540, %v1467
      %v1670 = vsub.f32 %v1544, %v1467
      %v1671 = vsub.f32 %v1476, %v1468
      %v1672 = vsub.f32 %v1480, %v1468
      %v1673 = vsub.f32 %v1484, %v1468
      %v1674 = vsub.f32 %v1488, %v1468
      %v1675 = vsub.f32 %v1492, %v1468
      %v1676 = vsub.f32 %v1496, %v1468
      %v1677 = vsub.f32 %v1500, %v1468
      %v1678 = vsub.f32 %v1504, %v1468
      %v1679 = vsub.f32 %v1508, %v1468
      %v1680 = vsub.f32 %v1512, %v1468
      %v1681 = vsub.f32 %v1516, %v1468
      %v1682 = vsub.f32 %v1520, %v1468
      %v1683 = vsub.f32 %v1524, %v1468
      %v1684 = vsub.f32 %v1528, %v1468
      %v1685 = vsub.f32 %v1532, %v1468
      %v1686 = vsub.f32 %v1536, %v1468
      %v1687 = vsub.f32 %v1540, %v1468
      %v1688 = vsub.f32 %v1544, %v1468
      %v1689 = vsub.f32 %v1476, %v1469
      %v1690 = vsub.f32 %v1480, %v1469
      %v1691 = vsub.f32 %v1484, %v1469
      %v1692 = vsub.f32 %v1488, %v1469
      %v1693 = vsub.f32 %v1492, %v1469
      %v1694 = vsub.f32 %v1496, %v1469
      %v1695 = vsub.f32 %v1500, %v1469
      %v1696 = vsub.f32 %v1504, %v1469
      %v1697 = vsub.f32 %v1508, %v1469
      %v1698 = vsub.f32 %v1512, %v1469
      %v1699 = vsub.f32 %v1516, %v1469
      %v1700 = vsub.f32 %v1520, %v1469
      %v1701 = vsub.f32 %v1524, %v1469
      %v1702 = vsub.f32 %v1528, %v1469
      %v1703 = vsub.f32 %v1532, %v1469
      %v1704 = vsub.f32 %v1536, %v1469
      %v1705 = vsub.f32 %v1540, %v1469
      %v1706 = vsub.f32 %v1544, %v1469
      %v1707 = vand.u32 2147483647, %v1563
      %v1708 = vand.u32 2147483647, %v1564
      %v1709 = vand.u32 2147483647, %v1565
      %v1710 = vand.u32 2147483647, %v1566
      %v1711 = vand.u32 2147483647, %v1567
      %v1712 = vand.u32 2147483647, %v1568
      %v1713 = vand.u32 2147483647, %v1569
      %v1714 = vand.u32 2147483647, %v1570
      %v1715 = vand.u32 2147483647, %v1571
      %v1716 = vand.u32 2147483647, %v1572
      %v1717 = vand.u32 2147483647, %v1573
      %v1718 = vand.u32 2147483647, %v1574
      %v1719 = vand.u32 2147483647, %v1575
      %v1720 = vand.u32 2147483647, %v1576
      %v1721 = vand.u32 2147483647, %v1577
      %v1722 = vand.u32 2147483647, %v1578
      %v1723 = vand.u32 2147483647, %v1579
      %v1724 = vand.u32 2147483647, %v1580
      %v1725 = vand.u32 2147483647, %v1581
      %v1726 = vand.u32 2147483647, %v1582
      %v1727 = vand.u32 2147483647, %v1583
      %v1728 = vand.u32 2147483647, %v1584
      %v1729 = vand.u32 2147483647, %v1585
      %v1730 = vand.u32 2147483647, %v1586
      %v1731 = vand.u32 2147483647, %v1587
      %v1732 = vand.u32 2147483647, %v1588
      %v1733 = vand.u32 2147483647, %v1589
      %v1734 = vand.u32 2147483647, %v1590
      %v1735 = vand.u32 2147483647, %v1591
      %v1736 = vand.u32 2147483647, %v1592
      %v1737 = vand.u32 2147483647, %v1593
      %v1738 = vand.u32 2147483647, %v1594
      %v1739 = vand.u32 2147483647, %v1595
      %v1740 = vand.u32 2147483647, %v1596
      %v1741 = vand.u32 2147483647, %v1597
      %v1742 = vand.u32 2147483647, %v1598
      %v1743 = vand.u32 2147483647, %v1599
      %v1744 = vand.u32 2147483647, %v1600
      %v1745 = vand.u32 2147483647, %v1601
      %v1746 = vand.u32 2147483647, %v1602
      %v1747 = vand.u32 2147483647, %v1603
      %v1748 = vand.u32 2147483647, %v1604
      %v1749 = vand.u32 2147483647, %v1605
      %v1750 = vand.u32 2147483647, %v1606
      %v1751 = vand.u32 2147483647, %v1607
      %v1752 = vand.u32 2147483647, %v1608
      %v1753 = vand.u32 2147483647, %v1609
      %v1754 = vand.u32 2147483647, %v1610
      %v1755 = vand.u32 2147483647, %v1611
      %v1756 = vand.u32 2147483647, %v1612
      %v1757 = vand.u32 2147483647, %v1613
      %v1758 = vand.u32 2147483647, %v1614
      %v1759 = vand.u32 2147483647, %v1615
      %v1760 = vand.u32 2147483647, %v1616
      %v1761 = vand.u32 2147483647, %v1617
      %v1762 = vand.u32 2147483647, %v1618
      %v1763 = vand.u32 2147483647, %v1619
      %v1764 = vand.u32 2147483647, %v1620
      %v1765 = vand.u32 2147483647, %v1621
      %v1766 = vand.u32 2147483647, %v1622
      %v1767 = vand.u32 2147483647, %v1623
      %v1768 = vand.u32 2147483647, %v1624
      %v1769 = vand.u32 2147483647, %v1625
      %v1770 = vand.u32 2147483647, %v1626
      %v1771 = vand.u32 2147483647, %v1627
      %v1772 = vand.u32 2147483647, %v1628
      %v1773 = vand.u32 2147483647, %v1629
      %v1774 = vand.u32 2147483647, %v1630
      %v1775 = vand.u32 2147483647, %v1631
      %v1776 = vand.u32 2147483647, %v1632
      %v1777 = vand.u32 2147483647, %v1633
      %v1778 = vand.u32 2147483647, %v1634
      %v1779 = vand.u32 2147483647, %v1635
      %v1780 = vand.u32 2147483647, %v1636
      %v1781 = vand.u32 2147483647, %v1637
      %v1782 = vand.u32 2147483647, %v1638
      %v1783 = vand.u32 2147483647, %v1639
      %v1784 = vand.u32 2147483647, %v1640
      %v1785 = vand.u32 2147483647, %v1641
      %v1786 = vand.u32 2147483647, %v1642
      %v1787 = vand.u32 2147483647, %v1643
      %v1788 = vand.u32 2147483647, %v1644
      %v1789 = vand.u32 2147483647, %v1645
      %v1790 = vand.u32 2147483647, %v1646
      %v1791 = vand.u32 2147483647, %v1647
      %v1792 = vand.u32 2147483647, %v1648
      %v1793 = vand.u32 2147483647, %v1649
      %v1794 = vand.u32 2147483647, %v1650
      %v1795 = vand.u32 2147483647, %v1651
      %v1796 = vand.u32 2147483647, %v1652
      %v1797 = vand.u32 2147483647, %v1653
      %v1798 = vand.u32 2147483647, %v1654
      %v1799 = vand.u32 2147483647, %v1655
      %v1800 = vand.u32 2147483647, %v1656
      %v1801 = vand.u32 2147483647, %v1657
      %v1802 = vand.u32 2147483647, %v1658
      %v1803 = vand.u32 2147483647, %v1659
      %v1804 = vand.u32 2147483647, %v1660
      %v1805 = vand.u32 2147483647, %v1661
      %v1806 = vand.u32 2147483647, %v1662
      %v1807 = vand.u32 2147483647, %v1663
      %v1808 = vand.u32 2147483647, %v1664
      %v1809 = vand.u32 2147483647, %v1665
      %v1810 = vand.u32 2147483647, %v1666
      %v1811 = vand.u32 2147483647, %v1667
      %v1812 = vand.u32 2147483647, %v1668
      %v1813 = vand.u32 2147483647, %v1669
      %v1814 = vand.u32 2147483647, %v1670
      %v1815 = vand.u32 2147483647, %v1671
      %v1816 = vand.u32 2147483647, %v1672
      %v1817 = vand.u32 2147483647, %v1673
      %v1818 = vand.u32 2147483647, %v1674
      %v1819 = vand.u32 2147483647, %v1675
      %v1820 = vand.u32 2147483647, %v1676
      %v1821 = vand.u32 2147483647, %v1677
      %v1822 = vand.u32 2147483647, %v1678
      %v1823 = vand.u32 2147483647, %v1679
      %v1824 = vand.u32 2147483647, %v1680
      %v1825 = vand.u32 2147483647, %v1681
      %v1826 = vand.u32 2147483647, %v1682
      %v1827 = vand.u32 2147483647, %v1683
      %v1828 = vand.u32 2147483647, %v1684
      %v1829 = vand.u32 2147483647, %v1685
      %v1830 = vand.u32 2147483647, %v1686
      %v1831 = vand.u32 2147483647, %v1687
      %v1832 = vand.u32 2147483647, %v1688
      %v1833 = vand.u32 2147483647, %v1689
      %v1834 = vand.u32 2147483647, %v1690
      %v1835 = vand.u32 2147483647, %v1691
      %v1836 = vand.u32 2147483647, %v1692
      %v1837 = vand.u32 2147483647, %v1693
      %v1838 = vand.u32 2147483647, %v1694
      %v1839 = vand.u32 2147483647, %v1695
      %v1840 = vand.u32 2147483647, %v1696
      %v1841 = vand.u32 2147483647, %v1697
      %v1842 = vand.u32 2147483647, %v1698
      %v1843 = vand.u32 2147483647, %v1699
      %v1844 = vand.u32 2147483647, %v1700
      %v1845 = vand.u32 2147483647, %v1701
      %v1846 = vand.u32 2147483647, %v1702
      %v1847 = vand.u32 2147483647, %v1703
      %v1848 = vand.u32 2147483647, %v1704
      %v1849 = vand.u32 2147483647, %v1705
      %v1850 = vand.u32 2147483647, %v1706
      %v1851 = vsub.f32 1.0, %v1707
      %v1852 = vsub.f32 1.0, %v1708
      %v1853 = vsub.f32 1.0, %v1709
      %v1854 = vsub.f32 1.0, %v1710
      %v1855 = vsub.f32 1.0, %v1711
      %v1856 = vsub.f32 1.0, %v1712
      %v1857 = vsub.f32 1.0, %v1713
      %v1858 = vsub.f32 1.0, %v1714
      %v1859 = vsub.f32 1.0, %v1715
      %v1860 = vsub.f32 1.0, %v1716
      %v1861 = vsub.f32 1.0, %v1717
      %v1862 = vsub.f32 1.0, %v1718
      %v1863 = vsub.f32 1.0, %v1719
      %v1864 = vsub.f32 1.0, %v1720
      %v1865 = vsub.f32 1.0, %v1721
      %v1866 = vsub.f32 1.0, %v1722
      %v1867 = vsub.f32 1.0, %v1723
      %v1868 = vsub.f32 1.0, %v1724
      %v1869 = vsub.f32 1.0, %v1725
      %v1870 = vsub.f32 1.0, %v1726
      %v1871 = vsub.f32 1.0, %v1727
      %v1872 = vsub.f32 1.0, %v1728
      %v1873 = vsub.f32 1.0, %v1729
      %v1874 = vsub.f32 1.0, %v1730
      %v1875 = vsub.f32 1.0, %v1731
      %v1876 = vsub.f32 1.0, %v1732
      %v1877 = vsub.f32 1.0, %v1733
      %v1878 = vsub.f32 1.0, %v1734
      %v1879 = vsub.f32 1.0, %v1735
      %v1880 = vsub.f32 1.0, %v1736
      %v1881 = vsub.f32 1.0, %v1737
      %v1882 = vsub.f32 1.0, %v1738
      %v1883 = vsub.f32 1.0, %v1739
      %v1884 = vsub.f32 1.0, %v1740
      %v1885 = vsub.f32 1.0, %v1741
      %v1886 = vsub.f32 1.0, %v1742
      %v1887 = vsub.f32 1.0, %v1743
      %v1888 = vsub.f32 1.0, %v1744
      %v1889 = vsub.f32 1.0, %v1745
      %v1890 = vsub.f32 1.0, %v1746
      %v1891 = vsub.f32 1.0, %v1747
      %v1892 = vsub.f32 1.0, %v1748
      %v1893 = vsub.f32 1.0, %v1749
      %v1894 = vsub.f32 1.0, %v1750
      %v1895 = vsub.f32 1.0, %v1751
      %v1896 = vsub.f32 1.0, %v1752
      %v1897 = vsub.f32 1.0, %v1753
      %v1898 = vsub.f32 1.0, %v1754
      %v1899 = vsub.f32 1.0, %v1755
      %v1900 = vsub.f32 1.0, %v1756
      %v1901 = vsub.f32 1.0, %v1757
      %v1902 = vsub.f32 1.0, %v1758
      %v1903 = vsub.f32 1.0, %v1759
      %v1904 = vsub.f32 1.0, %v1760
      %v1905 = vsub.f32 1.0, %v1761
      %v1906 = vsub.f32 1.0, %v1762
      %v1907 = vsub.f32 1.0, %v1763
      %v1908 = vsub.f32 1.0, %v1764
      %v1909 = vsub.f32 1.0, %v1765
      %v1910 = vsub.f32 1.0, %v1766
      %v1911 = vsub.f32 1.0, %v1767
      %v1912 = vsub.f32 1.0, %v1768
      %v1913 = vsub.f32 1.0, %v1769
      %v1914 = vsub.f32 1.0, %v1770
      %v1915 = vsub.f32 1.0, %v1771
      %v1916 = vsub.f32 1.0, %v1772
      %v1917 = vsub.f32 1.0, %v1773
      %v1918 = vsub.f32 1.0, %v1774
      %v1919 = vsub.f32 1.0, %v1775
      %v1920 = vsub.f32 1.0, %v1776
      %v1921 = vsub.f32 1.0, %v1777
      %v1922 = vsub.f32 1.0, %v1778
      %v1923 = vsub.f32 1.0, %v1779
      %v1924 = vsub.f32 1.0, %v1780
      %v1925 = vsub.f32 1.0, %v1781
      %v1926 = vsub.f32 1.0, %v1782
      %v1927 = vsub.f32 1.0, %v1783
      %v1928 = vsub.f32 1.0, %v1784
      %v1929 = vsub.f32 1.0, %v1785
      %v1930 = vsub.f32 1.0, %v1786
      %v1931 = vsub.f32 1.0, %v1787
      %v1932 = vsub.f32 1.0, %v1788
      %v1933 = vsub.f32 1.0, %v1789
      %v1934 = vsub.f32 1.0, %v1790
      %v1935 = vsub.f32 1.0, %v1791
      %v1936 = vsub.f32 1.0, %v1792
      %v1937 = vsub.f32 1.0, %v1793
      %v1938 = vsub.f32 1.0, %v1794
      %v1939 = vsub.f32 1.0, %v1795
      %v1940 = vsub.f32 1.0, %v1796
      %v1941 = vsub.f32 1.0, %v1797
      %v1942 = vsub.f32 1.0, %v1798
      %v1943 = vsub.f32 1.0, %v1799
      %v1944 = vsub.f32 1.0, %v1800
      %v1945 = vsub.f32 1.0, %v1801
      %v1946 = vsub.f32 1.0, %v1802
      %v1947 = vsub.f32 1.0, %v1803
      %v1948 = vsub.f32 1.0, %v1804
      %v1949 = vsub.f32 1.0, %v1805
      %v1950 = vsub.f32 1.0, %v1806
      %v1951 = vsub.f32 1.0, %v1807
      %v1952 = vsub.f32 1.0, %v1808
      %v1953 = vsub.f32 1.0, %v1809
      %v1954 = vsub.f32 1.0, %v1810
      %v1955 = vsub.f32 1.0, %v1811
      %v1956 = vsub.f32 1.0, %v1812
      %v1957 = vsub.f32 1.0, %v1813
      %v1958 = vsub.f32 1.0, %v1814
      %v1959 = vsub.f32 1.0, %v1815
      %v1960 = vsub.f32 1.0, %v1816
      %v1961 = vsub.f32 1.0, %v1817
      %v1962 = vsub.f32 1.0, %v1818
      %v1963 = vsub.f32 1.0, %v1819
      %v1964 = vsub.f32 1.0, %v1820
      %v1965 = vsub.f32 1.0, %v1821
      %v1966 = vsub.f32 1.0, %v1822
      %v1967 = vsub.f32 1.0, %v1823
      %v1968 = vsub.f32 1.0, %v1824
      %v1969 = vsub.f32 1.0, %v1825
      %v1970 = vsub.f32 1.0, %v1826
      %v1971 = vsub.f32 1.0, %v1827
      %v1972 = vsub.f32 1.0, %v1828
      %v1973 = vsub.f32 1.0, %v1829
      %v1974 = vsub.f32 1.0, %v1830
      %v1975 = vsub.f32 1.0, %v1831
      %v1976 = vsub.f32 1.0, %v1832
      %v1977 = vsub.f32 1.0, %v1833
      %v1978 = vsub.f32 1.0, %v1834
      %v1979 = vsub.f32 1.0, %v1835
      %v1980 = vsub.f32 1.0, %v1836
      %v1981 = vsub.f32 1.0, %v1837
      %v1982 = vsub.f32 1.0, %v1838
      %v1983 = vsub.f32 1.0, %v1839
      %v1984 = vsub.f32 1.0, %v1840
      %v1985 = vsub.f32 1.0, %v1841
      %v1986 = vsub.f32 1.0, %v1842
      %v1987 = vsub.f32 1.0, %v1843
      %v1988 = vsub.f32 1.0, %v1844
      %v1989 = vsub.f32 1.0, %v1845
      %v1990 = vsub.f32 1.0, %v1846
      %v1991 = vsub.f32 1.0, %v1847
      %v1992 = vsub.f32 1.0, %v1848
      %v1993 = vsub.f32 1.0, %v1849
      %v1994 = vsub.f32 1.0, %v1850
      %v1995 = vmax.f32 %v1851, 0.0
      %v1996 = vmax.f32 %v1852, 0.0
      %v1997 = vmax.f32 %v1853, 0.0
      %v1998 = vmax.f32 %v1854, 0.0
      %v1999 = vmax.f32 %v1855, 0.0
      %v2000 = vmax.f32 %v1856, 0.0
      %v2001 = vmax.f32 %v1857, 0.0
      %v2002 = vmax.f32 %v1858, 0.0
      %v2003 = vmax.f32 %v1859, 0.0
      %v2004 = vmax.f32 %v1860, 0.0
      %v2005 = vmax.f32 %v1861, 0.0
      %v2006 = vmax.f32 %v1862, 0.0
      %v2007 = vmax.f32 %v1863, 0.0
      %v2008 = vmax.f32 %v1864, 0.0
      %v2009 = vmax.f32 %v1865, 0.0
      %v2010 = vmax.f32 %v1866, 0.0
      %v2011 = vmax.f32 %v1867, 0.0
      %v2012 = vmax.f32 %v1868, 0.0
      %v2013 = vmax.f32 %v1869, 0.0
      %v2014 = vmax.f32 %v1870, 0.0
      %v2015 = vmax.f32 %v1871, 0.0
      %v2016 = vmax.f32 %v1872, 0.0
      %v2017 = vmax.f32 %v1873, 0.0
      %v2018 = vmax.f32 %v1874, 0.0
      %v2019 = vmax.f32 %v1875, 0.0
      %v2020 = vmax.f32 %v1876, 0.0
      %v2021 = vmax.f32 %v1877, 0.0
      %v2022 = vmax.f32 %v1878, 0.0
      %v2023 = vmax.f32 %v1879, 0.0
      %v2024 = vmax.f32 %v1880, 0.0
      %v2025 = vmax.f32 %v1881, 0.0
      %v2026 = vmax.f32 %v1882, 0.0
      %v2027 = vmax.f32 %v1883, 0.0
      %v2028 = vmax.f32 %v1884, 0.0
      %v2029 = vmax.f32 %v1885, 0.0
      %v2030 = vmax.f32 %v1886, 0.0
      %v2031 = vmax.f32 %v1887, 0.0
      %v2032 = vmax.f32 %v1888, 0.0
      %v2033 = vmax.f32 %v1889, 0.0
      %v2034 = vmax.f32 %v1890, 0.0
      %v2035 = vmax.f32 %v1891, 0.0
      %v2036 = vmax.f32 %v1892, 0.0
      %v2037 = vmax.f32 %v1893, 0.0
      %v2038 = vmax.f32 %v1894, 0.0
      %v2039 = vmax.f32 %v1895, 0.0
      %v2040 = vmax.f32 %v1896, 0.0
      %v2041 = vmax.f32 %v1897, 0.0
      %v2042 = vmax.f32 %v1898, 0.0
      %v2043 = vmax.f32 %v1899, 0.0
      %v2044 = vmax.f32 %v1900, 0.0
      %v2045 = vmax.f32 %v1901, 0.0
      %v2046 = vmax.f32 %v1902, 0.0
      %v2047 = vmax.f32 %v1903, 0.0
      %v2048 = vmax.f32 %v1904, 0.0
      %v2049 = vmax.f32 %v1905, 0.0
      %v2050 = vmax.f32 %v1906, 0.0
      %v2051 = vmax.f32 %v1907, 0.0
      %v2052 = vmax.f32 %v1908, 0.0
      %v2053 = vmax.f32 %v1909, 0.0
      %v2054 = vmax.f32 %v1910, 0.0
      %v2055 = vmax.f32 %v1911, 0.0
      %v2056 = vmax.f32 %v1912, 0.0
      %v2057 = vmax.f32 %v1913, 0.0
      %v2058 = vmax.f32 %v1914, 0.0
      %v2059 = vmax.f32 %v1915, 0.0
      %v2060 = vmax.f32 %v1916, 0.0
      %v2061 = vmax.f32 %v1917, 0.0
      %v2062 = vmax.f32 %v1918, 0.0
      %v2063 = vmax.f32 %v1919, 0.0
      %v2064 = vmax.f32 %v1920, 0.0
      %v2065 = vmax.f32 %v1921, 0.0
      %v2066 = vmax.f32 %v1922, 0.0
      %v2067 = vmax.f32 %v1923, 0.0
      %v2068 = vmax.f32 %v1924, 0.0
      %v2069 = vmax.f32 %v1925, 0.0
      %v2070 = vmax.f32 %v1926, 0.0
      %v2071 = vmax.f32 %v1927, 0.0
      %v2072 = vmax.f32 %v1928, 0.0
      %v2073 = vmax.f32 %v1929, 0.0
      %v2074 = vmax.f32 %v1930, 0.0
      %v2075 = vmax.f32 %v1931, 0.0
      %v2076 = vmax.f32 %v1932, 0.0
      %v2077 = vmax.f32 %v1933, 0.0
      %v2078 = vmax.f32 %v1934, 0.0
      %v2079 = vmax.f32 %v1935, 0.0
      %v2080 = vmax.f32 %v1936, 0.0
      %v2081 = vmax.f32 %v1937, 0.0
      %v2082 = vmax.f32 %v1938, 0.0
      %v2083 = vmax.f32 %v1939, 0.0
      %v2084 = vmax.f32 %v1940, 0.0
      %v2085 = vmax.f32 %v1941, 0.0
      %v2086 = vmax.f32 %v1942, 0.0
      %v2087 = vmax.f32 %v1943, 0.0
      %v2088 = vmax.f32 %v1944, 0.0
      %v2089 = vmax.f32 %v1945, 0.0
      %v2090 = vmax.f32 %v1946, 0.0
      %v2091 = vmax.f32 %v1947, 0.0
      %v2092 = vmax.f32 %v1948, 0.0
      %v2093 = vmax.f32 %v1949, 0.0
      %v2094 = vmax.f32 %v1950, 0.0
      %v2095 = vmax.f32 %v1951, 0.0
      %v2096 = vmax.f32 %v1952, 0.0
      %v2097 = vmax.f32 %v1953, 0.0
      %v2098 = vmax.f32 %v1954, 0.0
      %v2099 = vmax.f32 %v1955, 0.0
      %v2100 = vmax.f32 %v1956, 0.0
      %v2101 = vmax.f32 %v1957, 0.0
      %v2102 = vmax.f32 %v1958, 0.0
      %v2103 = vmax.f32 %v1959, 0.0
      %v2104 = vmax.f32 %v1960, 0.0
      %v2105 = vmax.f32 %v1961, 0.0
      %v2106 = vmax.f32 %v1962, 0.0
      %v2107 = vmax.f32 %v1963, 0.0
      %v2108 = vmax.f32 %v1964, 0.0
      %v2109 = vmax.f32 %v1965, 0.0
      %v2110 = vmax.f32 %v1966, 0.0
      %v2111 = vmax.f32 %v1967, 0.0
      %v2112 = vmax.f32 %v1968, 0.0
      %v2113 = vmax.f32 %v1969, 0.0
      %v2114 = vmax.f32 %v1970, 0.0
      %v2115 = vmax.f32 %v1971, 0.0
      %v2116 = vmax.f32 %v1972, 0.0
      %v2117 = vmax.f32 %v1973, 0.0
      %v2118 = vmax.f32 %v1974, 0.0
      %v2119 = vmax.f32 %v1975, 0.0
      %v2120 = vmax.f32 %v1976, 0.0
      %v2121 = vmax.f32 %v1977, 0.0
      %v2122 = vmax.f32 %v1978, 0.0
      %v2123 = vmax.f32 %v1979, 0.0
      %v2124 = vmax.f32 %v1980, 0.0
      %v2125 = vmax.f32 %v1981, 0.0
      %v2126 = vmax.f32 %v1982, 0.0
      %v2127 = vmax.f32 %v1983, 0.0
      %v2128 = vmax.f32 %v1984, 0.0
      %v2129 = vmax.f32 %v1985, 0.0
      %v2130 = vmax.f32 %v1986, 0.0
      %v2131 = vmax.f32 %v1987, 0.0
      %v2132 = vmax.f32 %v1988, 0.0
      %v2133 = vmax.f32 %v1989, 0.0
      %v2134 = vmax.f32 %v1990, 0.0
      %v2135 = vmax.f32 %v1991, 0.0
      %v2136 = vmax.f32 %v1992, 0.0
      %v2137 = vmax.f32 %v1993, 0.0
      %v2138 = vmax.f32 %v1994, 0.0
      %v2139 = vmul.f32 %v738, %v1995
      %v2140 = vmul.f32 %v740, %v1996
      %v2141 = vmul.f32 %v811, %v1997
      %v2142 = vmul.f32 %v813, %v1998
      %v2143 = vmul.f32 %v884, %v1999
      %v2144 = vmul.f32 %v886, %v2000
      %v2145 = vmul.f32 %v957, %v2001
      %v2146 = vmul.f32 %v959, %v2002
      %v2147 = vmul.f32 %v1030, %v2003
      %v2148 = vmul.f32 %v1032, %v2004
      %v2149 = vmul.f32 %v1103, %v2005
      %v2150 = vmul.f32 %v1105, %v2006
      %v2151 = vmul.f32 %v1176, %v2007
      %v2152 = vmul.f32 %v1178, %v2008
      %v2153 = vmul.f32 %v1249, %v2009
      %v2154 = vmul.f32 %v1251, %v2010
      %v2155 = vmul.f32 %v1322, %v2011
      %v2156 = vmul.f32 %v1324, %v2012
      %v2157 = vmul.f32 %v742, %v2013
      %v2158 = vmul.f32 %v744, %v2014
      %v2159 = vmul.f32 %v815, %v2015
      %v2160 = vmul.f32 %v817, %v2016
      %v2161 = vmul.f32 %v888, %v2017
      %v2162 = vmul.f32 %v890, %v2018
      %v2163 = vmul.f32 %v961, %v2019
      %v2164 = vmul.f32 %v963, %v2020
      %v2165 = vmul.f32 %v1034, %v2021
      %v2166 = vmul.f32 %v1036, %v2022
      %v2167 = vmul.f32 %v1107, %v2023
      %v2168 = vmul.f32 %v1109, %v2024
      %v2169 = vmul.f32 %v1180, %v2025
      %v2170 = vmul.f32 %v1182, %v2026
      %v2171 = vmul.f32 %v1253, %v2027
      %v2172 = vmul.f32 %v1255, %v2028
      %v2173 = vmul.f32 %v1326, %v2029
      %v2174 = vmul.f32 %v1328, %v2030
      %v2175 = vmul.f32 %v748, %v2031
      %v2176 = vmul.f32 %v750, %v2032
      %v2177 = vmul.f32 %v821, %v2033
      %v2178 = vmul.f32 %v823, %v2034
      %v2179 = vmul.f32 %v894, %v2035
      %v2180 = vmul.f32 %v896, %v2036
      %v2181 = vmul.f32 %v967, %v2037
      %v2182 = vmul.f32 %v969, %v2038
      %v2183 = vmul.f32 %v1040, %v2039
      %v2184 = vmul.f32 %v1042, %v2040
      %v2185 = vmul.f32 %v1113, %v2041
      %v2186 = vmul.f32 %v1115, %v2042
      %v2187 = vmul.f32 %v1186, %v2043
      %v2188 = vmul.f32 %v1188, %v2044
      %v2189 = vmul.f32 %v1259, %v2045
      %v2190 = vmul.f32 %v1261, %v2046
      %v2191 = vmul.f32 %v1332, %v2047
      %v2192 = vmul.f32 %v1334, %v2048
      %v2193 = vmul.f32 %v752, %v2049
      %v2194 = vmul.f32 %v754, %v2050
      %v2195 = vmul.f32 %v825, %v2051
      %v2196 = vmul.f32 %v827, %v2052
      %v2197 = vmul.f32 %v898, %v2053
      %v2198 = vmul.f32 %v900, %v2054
      %v2199 = vmul.f32 %v971, %v2055
      %v2200 = vmul.f32 %v973, %v2056
      %v2201 = vmul.f32 %v1044, %v2057
      %v2202 = vmul.f32 %v1046, %v2058
      %v2203 = vmul.f32 %v1117, %v2059
      %v2204 = vmul.f32 %v1119, %v2060
      %v2205 = vmul.f32 %v1190, %v2061
      %v2206 = vmul.f32 %v1192, %v2062
      %v2207 = vmul.f32 %v1263, %v2063
      %v2208 = vmul.f32 %v1265, %v2064
      %v2209 = vmul.f32 %v1336, %v2065
      %v2210 = vmul.f32 %v1338, %v2066
      %v2211 = vmul.f32 %v758, %v2067
      %v2212 = vmul.f32 %v760, %v2068
      %v2213 = vmul.f32 %v831, %v2069
      %v2214 = vmul.f32 %v833, %v2070
      %v2215 = vmul.f32 %v904, %v2071
      %v2216 = vmul.f32 %v906, %v2072
      %v2217 = vmul.f32 %v977, %v2073
      %v2218 = vmul.f32 %v979, %v2074
      %v2219 = vmul.f32 %v1050, %v2075
      %v2220 = vmul.f32 %v1052, %v2076
      %v2221 = vmul.f32 %v1123, %v2077
      %v2222 = vmul.f32 %v1125, %v2078
      %v2223 = vmul.f32 %v1196, %v2079
      %v2224 = vmul.f32 %v1198, %v2080
      %v2225 = vmul.f32 %v1269, %v2081
      %v2226 = vmul.f32 %v1271, %v2082
      %v2227 = vmul.f32 %v1342, %v2083
      %v2228 = vmul.f32 %v1344, %v2084
      %v2229 = vmul.f32 %v762, %v2085
      %v2230 = vmul.f32 %v764, %v2086
      %v2231 = vmul.f32 %v835, %v2087
      %v2232 = vmul.f32 %v837, %v2088
      %v2233 = vmul.f32 %v908, %v2089
      %v2234 = vmul.f32 %v910, %v2090
      %v2235 = vmul.f32 %v981, %v2091
      %v2236 = vmul.f32 %v983, %v2092
      %v2237 = vmul.f32 %v1054, %v2093
      %v2238 = vmul.f32 %v1056, %v2094
      %v2239 = vmul.f32 %v1127, %v2095
      %v2240 = vmul.f32 %v1129, %v2096
      %v2241 = vmul.f32 %v1200, %v2097
      %v2242 = vmul.f32 %v1202, %v2098
      %v2243 = vmul.f32 %v1273, %v2099
      %v2244 = vmul.f32 %v1275, %v2100
      %v2245 = vmul.f32 %v1346, %v2101
      %v2246 = vmul.f32 %v1348, %v2102
      %v2247 = vmul.f32 %v768, %v2103
      %v2248 = vmul.f32 %v770, %v2104
      %v2249 = vmul.f32 %v841, %v2105
      %v2250 = vmul.f32 %v843, %v2106
      %v2251 = vmul.f32 %v914, %v2107
      %v2252 = vmul.f32 %v916, %v2108
      %v2253 = vmul.f32 %v987, %v2109
      %v2254 = vmul.f32 %v989, %v2110
      %v2255 = vmul.f32 %v1060, %v2111
      %v2256 = vmul.f32 %v1062, %v2112
      %v2257 = vmul.f32 %v1133, %v2113
      %v2258 = vmul.f32 %v1135, %v2114
      %v2259 = vmul.f32 %v1206, %v2115
      %v2260 = vmul.f32 %v1208, %v2116
      %v2261 = vmul.f32 %v1279, %v2117
      %v2262 = vmul.f32 %v1281, %v2118
      %v2263 = vmul.f32 %v1352, %v2119
      %v2264 = vmul.f32 %v1354, %v2120
      %v2265 = vmul.f32 %v772, %v2121
      %v2266 = vmul.f32 %v774, %v2122
      %v2267 = vmul.f32 %v845, %v2123
      %v2268 = vmul.f32 %v847, %v2124
      %v2269 = vmul.f32 %v918, %v2125
      %v2270 = vmul.f32 %v920, %v2126
      %v2271 = vmul.f32 %v991, %v2127
      %v2272 = vmul.f32 %v993, %v2128
      %v2273 = vmul.f32 %v1064, %v2129
      %v2274 = vmul.f32 %v1066, %v2130
      %v2275 = vmul.f32 %v1137, %v2131
      %v2276 = vmul.f32 %v1139, %v2132
      %v2277 = vmul.f32 %v1210, %v2133
      %v2278 = vmul.f32 %v1212, %v2134
      %v2279 = vmul.f32 %v1283, %v2135
      %v2280 = vmul.f32 %v1285, %v2136
      %v2281 = vmul.f32 %v1356, %v2137
      %v2282 = vmul.f32 %v1358, %v2138
      %v2283 = vpack.c.bf16 %v2157, %v2139
      %v2284 = vpack.c.bf16 %v2158, %v2140
      %v2285 = vpack.c.bf16 %v2159, %v2141
      %v2286 = vpack.c.bf16 %v2160, %v2142
      %v2287 = vpack.c.bf16 %v2161, %v2143
      %v2288 = vpack.c.bf16 %v2162, %v2144
      %v2289 = vpack.c.bf16 %v2163, %v2145
      %v2290 = vpack.c.bf16 %v2164, %v2146
      %v2291 = vpack.c.bf16 %v2165, %v2147
      %v2292 = vpack.c.bf16 %v2166, %v2148
      %v2293 = vpack.c.bf16 %v2167, %v2149
      %v2294 = vpack.c.bf16 %v2168, %v2150
      %v2295 = vpack.c.bf16 %v2169, %v2151
      %v2296 = vpack.c.bf16 %v2170, %v2152
      %v2297 = vpack.c.bf16 %v2171, %v2153
      %v2298 = vpack.c.bf16 %v2172, %v2154
      %v2299 = vpack.c.bf16 %v2173, %v2155
      %v2300 = vpack.c.bf16 %v2174, %v2156
      %v2301 = vpack.c.bf16 %v2193, %v2175
      %v2302 = vpack.c.bf16 %v2194, %v2176
      %v2303 = vpack.c.bf16 %v2195, %v2177
      %v2304 = vpack.c.bf16 %v2196, %v2178
      %v2305 = vpack.c.bf16 %v2197, %v2179
      %v2306 = vpack.c.bf16 %v2198, %v2180
      %v2307 = vpack.c.bf16 %v2199, %v2181
      %v2308 = vpack.c.bf16 %v2200, %v2182
      %v2309 = vpack.c.bf16 %v2201, %v2183
      %v2310 = vpack.c.bf16 %v2202, %v2184
      %v2311 = vpack.c.bf16 %v2203, %v2185
      %v2312 = vpack.c.bf16 %v2204, %v2186
      %v2313 = vpack.c.bf16 %v2205, %v2187
      %v2314 = vpack.c.bf16 %v2206, %v2188
      %v2315 = vpack.c.bf16 %v2207, %v2189
      %v2316 = vpack.c.bf16 %v2208, %v2190
      %v2317 = vpack.c.bf16 %v2209, %v2191
      %v2318 = vpack.c.bf16 %v2210, %v2192
      %v2319 = vpack.c.bf16 %v2229, %v2211
      %v2320 = vpack.c.bf16 %v2230, %v2212
      %v2321 = vpack.c.bf16 %v2231, %v2213
      %v2322 = vpack.c.bf16 %v2232, %v2214
      %v2323 = vpack.c.bf16 %v2233, %v2215
      %v2324 = vpack.c.bf16 %v2234, %v2216
      %v2325 = vpack.c.bf16 %v2235, %v2217
      %v2326 = vpack.c.bf16 %v2236, %v2218
      %v2327 = vpack.c.bf16 %v2237, %v2219
      %v2328 = vpack.c.bf16 %v2238, %v2220
      %v2329 = vpack.c.bf16 %v2239, %v2221
      %v2330 = vpack.c.bf16 %v2240, %v2222
      %v2331 = vpack.c.bf16 %v2241, %v2223
      %v2332 = vpack.c.bf16 %v2242, %v2224
      %v2333 = vpack.c.bf16 %v2243, %v2225
      %v2334 = vpack.c.bf16 %v2244, %v2226
      %v2335 = vpack.c.bf16 %v2245, %v2227
      %v2336 = vpack.c.bf16 %v2246, %v2228
      %v2337 = vpack.c.bf16 %v2265, %v2247
      %v2338 = vpack.c.bf16 %v2266, %v2248
      %v2339 = vpack.c.bf16 %v2267, %v2249
      %v2340 = vpack.c.bf16 %v2268, %v2250
      %v2341 = vpack.c.bf16 %v2269, %v2251
      %v2342 = vpack.c.bf16 %v2270, %v2252
      %v2343 = vpack.c.bf16 %v2271, %v2253
      %v2344 = vpack.c.bf16 %v2272, %v2254
      %v2345 = vpack.c.bf16 %v2273, %v2255
      %v2346 = vpack.c.bf16 %v2274, %v2256
      %v2347 = vpack.c.bf16 %v2275, %v2257
      %v2348 = vpack.c.bf16 %v2276, %v2258
      %v2349 = vpack.c.bf16 %v2277, %v2259
      %v2350 = vpack.c.bf16 %v2278, %v2260
      %v2351 = vpack.c.bf16 %v2279, %v2261
      %v2352 = vpack.c.bf16 %v2280, %v2262
      %v2353 = vpack.c.bf16 %v2281, %v2263
      %v2354 = vpack.c.bf16 %v2282, %v2264
      %v2355 = vld [vmem:[%s2] sm:$0xf]
      %v2356 = vld [vmem:[%s2 + $0x4] sm:$0xf]
      %s2357 = scalar_lea.vmem %s2, 8
      %v2358 = vld [vmem:[%s2357] sm:$0xf]
      %v2359 = vld [vmem:[%s2357 + $0x4] sm:$0xf]
      %v2362 = vunpack.c.l.b16 %v2358
      %v2363 = vunpack.c.l.b16 %v2359
      %v2364 = vpack.c.b16 %v2363, %v2362
      %vm2365 = vcmask 523264
      %v2367 = vsel %vm2365, %v2364, 0
      %2369 = vmatprep.subr.bf16.mxu0 0
      %2370 = vmatpush1.bf16.msra.mxu0 0
      %2371 = vmatprep.subr.bf16.mxu0 0
      %2372 = vmatpush1.bf16.msra.mxu0 0
      %2373 = vmatprep.subr.bf16.mxu0 0
      %2374 = vmatpush1.bf16.msra.mxu0 0
      %2375 = vmatprep.subr.bf16.mxu0 0
      %2376 = vmatpush1.bf16.msra.mxu0 0
      %2377 = vmatprep.subr.bf16.mxu0 %v2340
      %2378 = vmatpush1.bf16.msra.mxu0 %v2339
      %2379 = vmatprep.subr.bf16.mxu0 %v2322
      %2380 = vmatpush1.bf16.msra.mxu0 %v2321
      %2381 = vmatprep.subr.bf16.mxu0 %v2304
      %2382 = vmatpush1.bf16.msra.mxu0 %v2303
      %2383 = vmatprep.subr.bf16.mxu0 %v2286
      %2384 = vmatpush1.bf16.msra.mxu0 %v2285
      %2385 = vmatprep.subr.bf16.mxu0 0
      %2386 = vmatpush2.bf16.msra.mxu0 0
      %2387 = vmatprep.subr.bf16.mxu0 0
      %2388 = vmatpush2.bf16.msra.mxu0 0
      %2389 = vmatprep.subr.bf16.mxu0 0
      %2390 = vmatpush2.bf16.msra.mxu0 0
      %2391 = vmatprep.subr.bf16.mxu0 0
      %2392 = vmatpush2.bf16.msra.mxu0 0
      %2393 = vmatprep.subr.bf16.mxu0 0
      %2394 = vmatpush2.bf16.msra.mxu0 0
      %2395 = vmatprep.subr.bf16.mxu0 0
      %2396 = vmatpush2.bf16.msra.mxu0 0
      %2397 = vmatprep.subr.bf16.mxu0 0
      %2398 = vmatpush2.bf16.msra.mxu0 0
      %2399 = vmatprep.subr.bf16.mxu0 0
      %2400 = vmatpush2.bf16.msra.mxu0 0
      %2401 = vmatprep.mubr.bf16.mxu0 0
      %2402 = vmatmul.mubr.bf16.gmra.mxu0 %v2367
      %v2403 = vpop.f32.mrf.mxu0
      %v2404 = vadd.f32 0.0, %v2403
      %v2405 = vpop.f32.mrf.mxu0
      %v2406 = vadd.f32 0.0, %v2405
      %v2407 = vpop.f32.mrf.mxu0
      %v2408 = vadd.f32 0.0, %v2407
      %v2409 = vpop.f32.mrf.mxu0
      %v2410 = vadd.f32 0.0, %v2409
      %2411 = vdwg.mxu0
      %v2414 = vunpack.c.l.b16 %v2355
      %v2415 = vunpack.c.l.b16 %v2356
      %v2416 = vpack.c.b16 %v2415, %v2414
      %v2418 = vsel %vm2365, %v2416, 0
      %2420 = vmatprep.subr.bf16.mxu0 0
      %2421 = vmatpush1.bf16.msra.mxu0 0
      %2422 = vmatprep.subr.bf16.mxu0 0
      %2423 = vmatpush1.bf16.msra.mxu0 0
      %2424 = vmatprep.subr.bf16.mxu0 0
      %2425 = vmatpush1.bf16.msra.mxu0 0
      %2426 = vmatprep.subr.bf16.mxu0 0
      %2427 = vmatpush1.bf16.msra.mxu0 0
      %2428 = vmatprep.subr.bf16.mxu0 %v2338
      %2429 = vmatpush1.bf16.msra.mxu0 %v2337
      %2430 = vmatprep.subr.bf16.mxu0 %v2320
      %2431 = vmatpush1.bf16.msra.mxu0 %v2319
      %2432 = vmatprep.subr.bf16.mxu0 %v2302
      %2433 = vmatpush1.bf16.msra.mxu0 %v2301
      %2434 = vmatprep.subr.bf16.mxu0 %v2284
      %2435 = vmatpush1.bf16.msra.mxu0 %v2283
      %2436 = vmatprep.subr.bf16.mxu0 0
      %2437 = vmatpush2.bf16.msra.mxu0 0
      %2438 = vmatprep.subr.bf16.mxu0 0
      %2439 = vmatpush2.bf16.msra.mxu0 0
      %2440 = vmatprep.subr.bf16.mxu0 0
      %2441 = vmatpush2.bf16.msra.mxu0 0
      %2442 = vmatprep.subr.bf16.mxu0 0
      %2443 = vmatpush2.bf16.msra.mxu0 0
      %2444 = vmatprep.subr.bf16.mxu0 0
      %2445 = vmatpush2.bf16.msra.mxu0 0
      %2446 = vmatprep.subr.bf16.mxu0 0
      %2447 = vmatpush2.bf16.msra.mxu0 0
      %2448 = vmatprep.subr.bf16.mxu0 0
      %2449 = vmatpush2.bf16.msra.mxu0 0
      %2450 = vmatprep.subr.bf16.mxu0 0
      %2451 = vmatpush2.bf16.msra.mxu0 0
      %2452 = vmatprep.mubr.bf16.mxu0 0
      %2453 = vmatmul.mubr.bf16.gmra.mxu0 %v2418
      %v2454 = vpop.f32.mrf.mxu0
      %v2455 = vadd.f32 %v2404, %v2454
      %v2456 = vpop.f32.mrf.mxu0
      %v2457 = vadd.f32 %v2406, %v2456
      %v2458 = vpop.f32.mrf.mxu0
      %v2459 = vadd.f32 %v2408, %v2458
      %v2460 = vpop.f32.mrf.mxu0
      %v2461 = vadd.f32 %v2410, %v2460
      %2462 = vdwg.mxu0
      %s2463 = scalar_lea.vmem %s2, 16
      %v2464 = vld [vmem:[%s2463] sm:$0xf]
      %v2465 = vld [vmem:[%s2463 + $0x4] sm:$0xf]
      %v2468 = vunpack.c.l.b16 %v2464
      %v2469 = vunpack.c.l.b16 %v2465
      %v2470 = vpack.c.b16 %v2469, %v2468
      %v2472 = vsel %vm2365, %v2470, 0
      %2474 = vmatprep.subr.bf16.mxu0 0
      %2475 = vmatpush1.bf16.msra.mxu0 0
      %2476 = vmatprep.subr.bf16.mxu0 0
      %2477 = vmatpush1.bf16.msra.mxu0 0
      %2478 = vmatprep.subr.bf16.mxu0 0
      %2479 = vmatpush1.bf16.msra.mxu0 0
      %2480 = vmatprep.subr.bf16.mxu0 0
      %2481 = vmatpush1.bf16.msra.mxu0 0
      %2482 = vmatprep.subr.bf16.mxu0 %v2342
      %2483 = vmatpush1.bf16.msra.mxu0 %v2341
      %2484 = vmatprep.subr.bf16.mxu0 %v2324
      %2485 = vmatpush1.bf16.msra.mxu0 %v2323
      %2486 = vmatprep.subr.bf16.mxu0 %v2306
      %2487 = vmatpush1.bf16.msra.mxu0 %v2305
      %2488 = vmatprep.subr.bf16.mxu0 %v2288
      %2489 = vmatpush1.bf16.msra.mxu0 %v2287
      %2490 = vmatprep.subr.bf16.mxu0 0
      %2491 = vmatpush2.bf16.msra.mxu0 0
      %2492 = vmatprep.subr.bf16.mxu0 0
      %2493 = vmatpush2.bf16.msra.mxu0 0
      %2494 = vmatprep.subr.bf16.mxu0 0
      %2495 = vmatpush2.bf16.msra.mxu0 0
      %2496 = vmatprep.subr.bf16.mxu0 0
      %2497 = vmatpush2.bf16.msra.mxu0 0
      %2498 = vmatprep.subr.bf16.mxu0 0
      %2499 = vmatpush2.bf16.msra.mxu0 0
      %2500 = vmatprep.subr.bf16.mxu0 0
      %2501 = vmatpush2.bf16.msra.mxu0 0
      %2502 = vmatprep.subr.bf16.mxu0 0
      %2503 = vmatpush2.bf16.msra.mxu0 0
      %2504 = vmatprep.subr.bf16.mxu0 0
      %2505 = vmatpush2.bf16.msra.mxu0 0
      %2506 = vmatprep.mubr.bf16.mxu0 0
      %2507 = vmatmul.mubr.bf16.gmra.mxu0 %v2472
      %v2508 = vpop.f32.mrf.mxu0
      %v2509 = vadd.f32 0.0, %v2508
      %v2510 = vpop.f32.mrf.mxu0
      %v2511 = vadd.f32 0.0, %v2510
      %v2512 = vpop.f32.mrf.mxu0
      %v2513 = vadd.f32 0.0, %v2512
      %v2514 = vpop.f32.mrf.mxu0
      %v2515 = vadd.f32 0.0, %v2514
      %2516 = vdwg.mxu0
      %v2517 = vadd.f32 %v2455, %v2509
      %v2518 = vadd.f32 %v2457, %v2511
      %v2519 = vadd.f32 %v2459, %v2513
      %v2520 = vadd.f32 %v2461, %v2515
      %s2521 = scalar_lea.vmem %s2, 24
      %v2522 = vld [vmem:[%s2521] sm:$0xf]
      %v2523 = vld [vmem:[%s2521 + $0x4] sm:$0xf]
      %v2526 = vunpack.c.l.b16 %v2522
      %v2527 = vunpack.c.l.b16 %v2523
      %v2528 = vpack.c.b16 %v2527, %v2526
      %v2530 = vsel %vm2365, %v2528, 0
      %2532 = vmatprep.subr.bf16.mxu0 0
      %2533 = vmatpush1.bf16.msra.mxu0 0
      %2534 = vmatprep.subr.bf16.mxu0 0
      %2535 = vmatpush1.bf16.msra.mxu0 0
      %2536 = vmatprep.subr.bf16.mxu0 0
      %2537 = vmatpush1.bf16.msra.mxu0 0
      %2538 = vmatprep.subr.bf16.mxu0 0
      %2539 = vmatpush1.bf16.msra.mxu0 0
      %2540 = vmatprep.subr.bf16.mxu0 %v2344
      %2541 = vmatpush1.bf16.msra.mxu0 %v2343
      %2542 = vmatprep.subr.bf16.mxu0 %v2326
      %2543 = vmatpush1.bf16.msra.mxu0 %v2325
      %2544 = vmatprep.subr.bf16.mxu0 %v2308
      %2545 = vmatpush1.bf16.msra.mxu0 %v2307
      %2546 = vmatprep.subr.bf16.mxu0 %v2290
      %2547 = vmatpush1.bf16.msra.mxu0 %v2289
      %2548 = vmatprep.subr.bf16.mxu0 0
      %2549 = vmatpush2.bf16.msra.mxu0 0
      %2550 = vmatprep.subr.bf16.mxu0 0
      %2551 = vmatpush2.bf16.msra.mxu0 0
      %2552 = vmatprep.subr.bf16.mxu0 0
      %2553 = vmatpush2.bf16.msra.mxu0 0
      %2554 = vmatprep.subr.bf16.mxu0 0
      %2555 = vmatpush2.bf16.msra.mxu0 0
      %2556 = vmatprep.subr.bf16.mxu0 0
      %2557 = vmatpush2.bf16.msra.mxu0 0
      %2558 = vmatprep.subr.bf16.mxu0 0
      %2559 = vmatpush2.bf16.msra.mxu0 0
      %2560 = vmatprep.subr.bf16.mxu0 0
      %2561 = vmatpush2.bf16.msra.mxu0 0
      %2562 = vmatprep.subr.bf16.mxu0 0
      %2563 = vmatpush2.bf16.msra.mxu0 0
      %2564 = vmatprep.mubr.bf16.mxu0 0
      %2565 = vmatmul.mubr.bf16.gmra.mxu0 %v2530
      %v2566 = vpop.f32.mrf.mxu0
      %v2567 = vadd.f32 0.0, %v2566
      %v2568 = vpop.f32.mrf.mxu0
      %v2569 = vadd.f32 0.0, %v2568
      %v2570 = vpop.f32.mrf.mxu0
      %v2571 = vadd.f32 0.0, %v2570
      %v2572 = vpop.f32.mrf.mxu0
      %v2573 = vadd.f32 0.0, %v2572
      %2574 = vdwg.mxu0
      %v2575 = vadd.f32 %v2517, %v2567
      %v2576 = vadd.f32 %v2518, %v2569
      %v2577 = vadd.f32 %v2519, %v2571
      %v2578 = vadd.f32 %v2520, %v2573
      %s2579 = scalar_lea.vmem %s2, 32
      %v2580 = vld [vmem:[%s2579] sm:$0xf]
      %v2581 = vld [vmem:[%s2579 + $0x4] sm:$0xf]
      %v2584 = vunpack.c.l.b16 %v2580
      %v2585 = vunpack.c.l.b16 %v2581
      %v2586 = vpack.c.b16 %v2585, %v2584
      %v2588 = vsel %vm2365, %v2586, 0
      %2590 = vmatprep.subr.bf16.mxu0 0
      %2591 = vmatpush1.bf16.msra.mxu0 0
      %2592 = vmatprep.subr.bf16.mxu0 0
      %2593 = vmatpush1.bf16.msra.mxu0 0
      %2594 = vmatprep.subr.bf16.mxu0 0
      %2595 = vmatpush1.bf16.msra.mxu0 0
      %2596 = vmatprep.subr.bf16.mxu0 0
      %2597 = vmatpush1.bf16.msra.mxu0 0
      %2598 = vmatprep.subr.bf16.mxu0 %v2346
      %2599 = vmatpush1.bf16.msra.mxu0 %v2345
      %2600 = vmatprep.subr.bf16.mxu0 %v2328
      %2601 = vmatpush1.bf16.msra.mxu0 %v2327
      %2602 = vmatprep.subr.bf16.mxu0 %v2310
      %2603 = vmatpush1.bf16.msra.mxu0 %v2309
      %2604 = vmatprep.subr.bf16.mxu0 %v2292
      %2605 = vmatpush1.bf16.msra.mxu0 %v2291
      %2606 = vmatprep.subr.bf16.mxu0 0
      %2607 = vmatpush2.bf16.msra.mxu0 0
      %2608 = vmatprep.subr.bf16.mxu0 0
      %2609 = vmatpush2.bf16.msra.mxu0 0
      %2610 = vmatprep.subr.bf16.mxu0 0
      %2611 = vmatpush2.bf16.msra.mxu0 0
      %2612 = vmatprep.subr.bf16.mxu0 0
      %2613 = vmatpush2.bf16.msra.mxu0 0
      %2614 = vmatprep.subr.bf16.mxu0 0
      %2615 = vmatpush2.bf16.msra.mxu0 0
      %2616 = vmatprep.subr.bf16.mxu0 0
      %2617 = vmatpush2.bf16.msra.mxu0 0
      %2618 = vmatprep.subr.bf16.mxu0 0
      %2619 = vmatpush2.bf16.msra.mxu0 0
      %2620 = vmatprep.subr.bf16.mxu0 0
      %2621 = vmatpush2.bf16.msra.mxu0 0
      %2622 = vmatprep.mubr.bf16.mxu0 0
      %2623 = vmatmul.mubr.bf16.gmra.mxu0 %v2588
      %v2624 = vpop.f32.mrf.mxu0
      %v2625 = vadd.f32 0.0, %v2624
      %v2626 = vpop.f32.mrf.mxu0
      %v2627 = vadd.f32 0.0, %v2626
      %v2628 = vpop.f32.mrf.mxu0
      %v2629 = vadd.f32 0.0, %v2628
      %v2630 = vpop.f32.mrf.mxu0
      %v2631 = vadd.f32 0.0, %v2630
      %2632 = vdwg.mxu0
      %v2633 = vadd.f32 %v2575, %v2625
      %v2634 = vadd.f32 %v2576, %v2627
      %v2635 = vadd.f32 %v2577, %v2629
      %v2636 = vadd.f32 %v2578, %v2631
      %s2637 = scalar_lea.vmem %s2, 40
      %v2638 = vld [vmem:[%s2637] sm:$0xf]
      %v2639 = vld [vmem:[%s2637 + $0x4] sm:$0xf]
      %v2642 = vunpack.c.l.b16 %v2638
      %v2643 = vunpack.c.l.b16 %v2639
      %v2644 = vpack.c.b16 %v2643, %v2642
      %v2646 = vsel %vm2365, %v2644, 0
      %2648 = vmatprep.subr.bf16.mxu0 0
      %2649 = vmatpush1.bf16.msra.mxu0 0
      %2650 = vmatprep.subr.bf16.mxu0 0
      %2651 = vmatpush1.bf16.msra.mxu0 0
      %2652 = vmatprep.subr.bf16.mxu0 0
      %2653 = vmatpush1.bf16.msra.mxu0 0
      %2654 = vmatprep.subr.bf16.mxu0 0
      %2655 = vmatpush1.bf16.msra.mxu0 0
      %2656 = vmatprep.subr.bf16.mxu0 %v2348
      %2657 = vmatpush1.bf16.msra.mxu0 %v2347
      %2658 = vmatprep.subr.bf16.mxu0 %v2330
      %2659 = vmatpush1.bf16.msra.mxu0 %v2329
      %2660 = vmatprep.subr.bf16.mxu0 %v2312
      %2661 = vmatpush1.bf16.msra.mxu0 %v2311
      %2662 = vmatprep.subr.bf16.mxu0 %v2294
      %2663 = vmatpush1.bf16.msra.mxu0 %v2293
      %2664 = vmatprep.subr.bf16.mxu0 0
      %2665 = vmatpush2.bf16.msra.mxu0 0
      %2666 = vmatprep.subr.bf16.mxu0 0
      %2667 = vmatpush2.bf16.msra.mxu0 0
      %2668 = vmatprep.subr.bf16.mxu0 0
      %2669 = vmatpush2.bf16.msra.mxu0 0
      %2670 = vmatprep.subr.bf16.mxu0 0
      %2671 = vmatpush2.bf16.msra.mxu0 0
      %2672 = vmatprep.subr.bf16.mxu0 0
      %2673 = vmatpush2.bf16.msra.mxu0 0
      %2674 = vmatprep.subr.bf16.mxu0 0
      %2675 = vmatpush2.bf16.msra.mxu0 0
      %2676 = vmatprep.subr.bf16.mxu0 0
      %2677 = vmatpush2.bf16.msra.mxu0 0
      %2678 = vmatprep.subr.bf16.mxu0 0
      %2679 = vmatpush2.bf16.msra.mxu0 0
      %2680 = vmatprep.mubr.bf16.mxu0 0
      %2681 = vmatmul.mubr.bf16.gmra.mxu0 %v2646
      %v2682 = vpop.f32.mrf.mxu0
      %v2683 = vadd.f32 0.0, %v2682
      %v2684 = vpop.f32.mrf.mxu0
      %v2685 = vadd.f32 0.0, %v2684
      %v2686 = vpop.f32.mrf.mxu0
      %v2687 = vadd.f32 0.0, %v2686
      %v2688 = vpop.f32.mrf.mxu0
      %v2689 = vadd.f32 0.0, %v2688
      %2690 = vdwg.mxu0
      %v2691 = vadd.f32 %v2633, %v2683
      %v2692 = vadd.f32 %v2634, %v2685
      %v2693 = vadd.f32 %v2635, %v2687
      %v2694 = vadd.f32 %v2636, %v2689
      %s2695 = scalar_lea.vmem %s2, 48
      %v2696 = vld [vmem:[%s2695] sm:$0xf]
      %v2697 = vld [vmem:[%s2695 + $0x4] sm:$0xf]
      %v2700 = vunpack.c.l.b16 %v2696
      %v2701 = vunpack.c.l.b16 %v2697
      %v2702 = vpack.c.b16 %v2701, %v2700
      %v2704 = vsel %vm2365, %v2702, 0
      %2706 = vmatprep.subr.bf16.mxu0 0
      %2707 = vmatpush1.bf16.msra.mxu0 0
      %2708 = vmatprep.subr.bf16.mxu0 0
      %2709 = vmatpush1.bf16.msra.mxu0 0
      %2710 = vmatprep.subr.bf16.mxu0 0
      %2711 = vmatpush1.bf16.msra.mxu0 0
      %2712 = vmatprep.subr.bf16.mxu0 0
      %2713 = vmatpush1.bf16.msra.mxu0 0
      %2714 = vmatprep.subr.bf16.mxu0 %v2350
      %2715 = vmatpush1.bf16.msra.mxu0 %v2349
      %2716 = vmatprep.subr.bf16.mxu0 %v2332
      %2717 = vmatpush1.bf16.msra.mxu0 %v2331
      %2718 = vmatprep.subr.bf16.mxu0 %v2314
      %2719 = vmatpush1.bf16.msra.mxu0 %v2313
      %2720 = vmatprep.subr.bf16.mxu0 %v2296
      %2721 = vmatpush1.bf16.msra.mxu0 %v2295
      %2722 = vmatprep.subr.bf16.mxu0 0
      %2723 = vmatpush2.bf16.msra.mxu0 0
      %2724 = vmatprep.subr.bf16.mxu0 0
      %2725 = vmatpush2.bf16.msra.mxu0 0
      %2726 = vmatprep.subr.bf16.mxu0 0
      %2727 = vmatpush2.bf16.msra.mxu0 0
      %2728 = vmatprep.subr.bf16.mxu0 0
      %2729 = vmatpush2.bf16.msra.mxu0 0
      %2730 = vmatprep.subr.bf16.mxu0 0
      %2731 = vmatpush2.bf16.msra.mxu0 0
      %2732 = vmatprep.subr.bf16.mxu0 0
      %2733 = vmatpush2.bf16.msra.mxu0 0
      %2734 = vmatprep.subr.bf16.mxu0 0
      %2735 = vmatpush2.bf16.msra.mxu0 0
      %2736 = vmatprep.subr.bf16.mxu0 0
      %2737 = vmatpush2.bf16.msra.mxu0 0
      %2738 = vmatprep.mubr.bf16.mxu0 0
      %2739 = vmatmul.mubr.bf16.gmra.mxu0 %v2704
      %v2740 = vpop.f32.mrf.mxu0
      %v2741 = vadd.f32 0.0, %v2740
      %v2742 = vpop.f32.mrf.mxu0
      %v2743 = vadd.f32 0.0, %v2742
      %v2744 = vpop.f32.mrf.mxu0
      %v2745 = vadd.f32 0.0, %v2744
      %v2746 = vpop.f32.mrf.mxu0
      %v2747 = vadd.f32 0.0, %v2746
      %2748 = vdwg.mxu0
      %v2749 = vadd.f32 %v2691, %v2741
      %v2750 = vadd.f32 %v2692, %v2743
      %v2751 = vadd.f32 %v2693, %v2745
      %v2752 = vadd.f32 %v2694, %v2747
      %s2753 = scalar_lea.vmem %s2, 56
      %v2754 = vld [vmem:[%s2753] sm:$0xf]
      %v2755 = vld [vmem:[%s2753 + $0x4] sm:$0xf]
      %v2758 = vunpack.c.l.b16 %v2754
      %v2759 = vunpack.c.l.b16 %v2755
      %v2760 = vpack.c.b16 %v2759, %v2758
      %v2762 = vsel %vm2365, %v2760, 0
      %2764 = vmatprep.subr.bf16.mxu0 0
      %2765 = vmatpush1.bf16.msra.mxu0 0
      %2766 = vmatprep.subr.bf16.mxu0 0
      %2767 = vmatpush1.bf16.msra.mxu0 0
      %2768 = vmatprep.subr.bf16.mxu0 0
      %2769 = vmatpush1.bf16.msra.mxu0 0
      %2770 = vmatprep.subr.bf16.mxu0 0
      %2771 = vmatpush1.bf16.msra.mxu0 0
      %2772 = vmatprep.subr.bf16.mxu0 %v2352
      %2773 = vmatpush1.bf16.msra.mxu0 %v2351
      %2774 = vmatprep.subr.bf16.mxu0 %v2334
      %2775 = vmatpush1.bf16.msra.mxu0 %v2333
      %2776 = vmatprep.subr.bf16.mxu0 %v2316
      %2777 = vmatpush1.bf16.msra.mxu0 %v2315
      %2778 = vmatprep.subr.bf16.mxu0 %v2298
      %2779 = vmatpush1.bf16.msra.mxu0 %v2297
      %2780 = vmatprep.subr.bf16.mxu0 0
      %2781 = vmatpush2.bf16.msra.mxu0 0
      %2782 = vmatprep.subr.bf16.mxu0 0
      %2783 = vmatpush2.bf16.msra.mxu0 0
      %2784 = vmatprep.subr.bf16.mxu0 0
      %2785 = vmatpush2.bf16.msra.mxu0 0
      %2786 = vmatprep.subr.bf16.mxu0 0
      %2787 = vmatpush2.bf16.msra.mxu0 0
      %2788 = vmatprep.subr.bf16.mxu0 0
      %2789 = vmatpush2.bf16.msra.mxu0 0
      %2790 = vmatprep.subr.bf16.mxu0 0
      %2791 = vmatpush2.bf16.msra.mxu0 0
      %2792 = vmatprep.subr.bf16.mxu0 0
      %2793 = vmatpush2.bf16.msra.mxu0 0
      %2794 = vmatprep.subr.bf16.mxu0 0
      %2795 = vmatpush2.bf16.msra.mxu0 0
      %2796 = vmatprep.mubr.bf16.mxu0 0
      %2797 = vmatmul.mubr.bf16.gmra.mxu0 %v2762
      %v2798 = vpop.f32.mrf.mxu0
      %v2799 = vadd.f32 0.0, %v2798
      %v2800 = vpop.f32.mrf.mxu0
      %v2801 = vadd.f32 0.0, %v2800
      %v2802 = vpop.f32.mrf.mxu0
      %v2803 = vadd.f32 0.0, %v2802
      %v2804 = vpop.f32.mrf.mxu0
      %v2805 = vadd.f32 0.0, %v2804
      %2806 = vdwg.mxu0
      %v2807 = vadd.f32 %v2749, %v2799
      %v2808 = vadd.f32 %v2750, %v2801
      %v2809 = vadd.f32 %v2751, %v2803
      %v2810 = vadd.f32 %v2752, %v2805
      %s2811 = scalar_lea.vmem %s2, 64
      %v2812 = vld [vmem:[%s2811] sm:$0xf]
      %v2813 = vld [vmem:[%s2811 + $0x4] sm:$0xf]
      %v2816 = vunpack.c.l.b16 %v2812
      %v2817 = vunpack.c.l.b16 %v2813
      %v2818 = vpack.c.b16 %v2817, %v2816
      %v2820 = vsel %vm2365, %v2818, 0
      %2822 = vmatprep.subr.bf16.mxu0 0
      %2823 = vmatpush1.bf16.msra.mxu0 0
      %2824 = vmatprep.subr.bf16.mxu0 0
      %2825 = vmatpush1.bf16.msra.mxu0 0
      %2826 = vmatprep.subr.bf16.mxu0 0
      %2827 = vmatpush1.bf16.msra.mxu0 0
      %2828 = vmatprep.subr.bf16.mxu0 0
      %2829 = vmatpush1.bf16.msra.mxu0 0
      %2830 = vmatprep.subr.bf16.mxu0 %v2354
      %2831 = vmatpush1.bf16.msra.mxu0 %v2353
      %2832 = vmatprep.subr.bf16.mxu0 %v2336
      %2833 = vmatpush1.bf16.msra.mxu0 %v2335
      %2834 = vmatprep.subr.bf16.mxu0 %v2318
      %2835 = vmatpush1.bf16.msra.mxu0 %v2317
      %2836 = vmatprep.subr.bf16.mxu0 %v2300
      %2837 = vmatpush1.bf16.msra.mxu0 %v2299
      %2838 = vmatprep.subr.bf16.mxu0 0
      %2839 = vmatpush2.bf16.msra.mxu0 0
      %2840 = vmatprep.subr.bf16.mxu0 0
      %2841 = vmatpush2.bf16.msra.mxu0 0
      %2842 = vmatprep.subr.bf16.mxu0 0
      %2843 = vmatpush2.bf16.msra.mxu0 0
      %2844 = vmatprep.subr.bf16.mxu0 0
      %2845 = vmatpush2.bf16.msra.mxu0 0
      %2846 = vmatprep.subr.bf16.mxu0 0
      %2847 = vmatpush2.bf16.msra.mxu0 0
      %2848 = vmatprep.subr.bf16.mxu0 0
      %2849 = vmatpush2.bf16.msra.mxu0 0
      %2850 = vmatprep.subr.bf16.mxu0 0
      %2851 = vmatpush2.bf16.msra.mxu0 0
      %2852 = vmatprep.subr.bf16.mxu0 0
      %2853 = vmatpush2.bf16.msra.mxu0 0
      %2854 = vmatprep.mubr.bf16.mxu0 0
      %2855 = vmatmul.mubr.bf16.gmra.mxu0 %v2820
      %v2856 = vpop.f32.mrf.mxu0
      %v2857 = vadd.f32 0.0, %v2856
      %v2858 = vpop.f32.mrf.mxu0
      %v2859 = vadd.f32 0.0, %v2858
      %v2860 = vpop.f32.mrf.mxu0
      %v2861 = vadd.f32 0.0, %v2860
      %v2862 = vpop.f32.mrf.mxu0
      %v2863 = vadd.f32 0.0, %v2862
      %2864 = vdwg.mxu0
      %v2865 = vadd.f32 %v2807, %v2857
      %v2866 = vadd.f32 %v2808, %v2859
      %v2867 = vadd.f32 %v2809, %v2861
      %v2868 = vadd.f32 %v2810, %v2863
      %v2869 = vld [vmem:[%s3] sm:$0xff]
      %v2870 = vld [vmem:[%s3 + $0x8] sm:$0xff]
      %2872 = vset.pattern.permute.xlu0 0
      %2873 = vperm.xlu0 %2872, %v2869
      %v2874 = vpop.permute.xlu0 %2873
      %2877 = vset.pattern.permute.xlu0 0
      %2878 = vperm.xlu0 %2877, %v2870
      %v2879 = vpop.permute.xlu0 %2878
      %v2881 = vadd.f32 %v2865, %v2874
      %v2882 = vadd.f32 %v2866, %v2874
      %v2883 = vadd.f32 %v2867, %v2879
      %v2884 = vadd.f32 %v2868, %v2879
      %2885 = vst [vmem:[%s253] sm:$0xff] %v2881
      %2886 = vst [vmem:[%s253 + $0x8] sm:$0xff] %v2882
      %2887 = vst [vmem:[%s253 + $0x10] sm:$0xff] %v2883
      %2888 = vst [vmem:[%s253 + $0x18] sm:$0xff] %v2884
      %s2889 = smul.u32 2, %s20
      %p2890 = scmp.lt.s32.totalorder %s19, 1
      %s2891 = scalar_select %p2890, %s19, 1
      %p2892 = scmp.lt.s32.totalorder %s2889, 1
      %s2893 = scalar_select %p2892, %s2889, 1
      %s2894 = smul.addr %s2891, 4
      %s2895 = sadd.s32 %s2893, %s2894
      %s2896 = smul.addr %s2895, 8
      %s2897 = scalar_lea.vmem %s4, %s2896
      // Predicated region
      $region37: #{modulated_deform_conv_pack_forward.1} parent=35 // pred_check
        %p2898 = pneg %p143
      $region38: #{modulated_deform_conv_pack_forward.1} parent=35 // pred_check_branch
        %2900 = sbr.rel (%p2898) target = $region40
      $region39: #{modulated_deform_conv_pack_forward.1} parent=35 // pred_region
        %s2901 = smul.u32 2, %s20
      $region40: #{modulated_deform_conv_pack_forward.1} parent=35 // pred_fallthru
        _
    $region36: #{modulated_deform_conv_pack_forward.1} parent=5 // pred_fallthru
      _
    %p2902 = scmp.le.s32.totalorder 2, %s10
    // Predicated region
    $region41: #{modulated_deform_conv_pack_forward.1} parent=5 // pred_check
      %p2903 = pneg %p2902
    $region42: #{modulated_deform_conv_pack_forward.1} parent=5 // pred_check_branch
      %2905 = sbr.rel (%p2903) target = $region44
    $region43: #{modulated_deform_conv_pack_forward.1} parent=5 // pred_region
      %s2906 = ssub.s32 %s10, 2
      // Predicated region
      $region45: #{modulated_deform_conv_pack_forward.1} parent=43 // pred_check
        %p2907 = pneg %p149
      $region46: #{modulated_deform_conv_pack_forward.1} parent=43 // pred_check_branch
        %2909 = sbr.rel (%p2907) target = $region48
      $region47: #{modulated_deform_conv_pack_forward.1} parent=43 // pred_region
        %s2910 = smul.u32 2, %s22
        %p2911 = scmp.lt.s32.totalorder %s21, 1
        %s2912 = scalar_select %p2911, %s21, 1
        %p2913 = scmp.lt.s32.totalorder %s2910, 1
        %s2914 = scalar_select %p2913, %s2910, 1
        %s2915 = smul.addr %s2912, 4
        %s2916 = sadd.s32 %s2914, %s2915
        %s2917 = smul.addr %s2916, 8
        %s2918 = scalar_lea.vmem %s4, %s2917
      $region48: #{modulated_deform_conv_pack_forward.1} parent=43 // pred_fallthru
        _
    $region44: #{modulated_deform_conv_pack_forward.1} parent=5 // pred_fallthru
      _
  $region6: #{modulated_deform_conv_pack_forward.1} parent=0 // loop_footer
    %s14 = sadd.s32 1, %s10
  $region7: #{modulated_deform_conv_pack_forward.1} parent=0 // loop_footer_branch
    %9 = sbr.rel target = $region3
  $region8: #{modulated_deform_conv_pack_forward.1} parent=0 // loop_exit
    _

</llo_original>
